<compile_context>
chip_gen: v7x
topology: tpu7x:2x2x1
jax: 0.10.0
libtpu: 0.0.40
codegen_flags: <defaults>
</compile_context>

<pallas_src>
import numpy as np
import jax
import jax.numpy as jnp
from jax.experimental import pallas as pl
from jax.experimental.pallas import tpu as pltpu

H = 32  # hidden size fixed by the module

# Row offsets inside the single packed parameter slab (see pack_params).
_R_WIH1, _R_WHH1, _R_WIH2, _R_WHH2 = 0, H, 2 * H, 3 * H   # 4 x (32, 96) gate weights
_R_BIAS = 4 * H                                            # 4 x (1, 96) gate biases
_R_WF = _R_BIAS + 4                                        # (32, 96) = [wf1_local | wf1_global | wf2]
_R_ROWA = _R_WF + H                                        # (1, 96)  = [w1 | b1 | bf1]
_R_ROWB = _R_ROWA + 1                                      # (1, 96)  = [bf2 | wf3 | bf3, pad]
_SLAB_ROWS = 168                                           # 166 rows padded up to a multiple of 8


def _gru_gates(gi, gh, h_prev):
    """PyTorch GRU cell from precomputed input/hidden projections (gate order r, z, n).
    sigmoid(v) == 0.5*tanh(0.5*v)+0.5: one fused EUP tanh for the r/z pair."""
    rz = 0.5 * jnp.tanh(0.5 * (gi[:, :2 * H] + gh[:, :2 * H])) + 0.5
    r = rz[:, :H]
    z = rz[:, H:]
    n = jnp.tanh(gi[:, 2 * H:] + r * gh[:, 2 * H:])
    return (1.0 - z) * n + z * h_prev


def _meta_solver_gru_kernel(x_ref, p_ref, out_ref):
    f32, bf16 = jnp.float32, jnp.bfloat16
    n = x_ref.shape[0]

    # ---- unpack the single packed parameter slab (static slices) ----
    w_ih1 = p_ref[_R_WIH1:_R_WIH1 + H, :]                   # (32, 96)
    w_hh1 = p_ref[_R_WHH1:_R_WHH1 + H, :]                   # (32, 96)
    w_ih2 = p_ref[_R_WIH2:_R_WIH2 + H, :]                   # (32, 96)
    w_hh2 = p_ref[_R_WHH2:_R_WHH2 + H, :]                   # (32, 96)
    b_ih1 = p_ref[_R_BIAS + 0:_R_BIAS + 1, :]               # (1, 96)
    b_hh1 = p_ref[_R_BIAS + 1:_R_BIAS + 2, :]
    b_ih2 = p_ref[_R_BIAS + 2:_R_BIAS + 3, :]
    b_hh2 = p_ref[_R_BIAS + 3:_R_BIAS + 4, :]
    wf1_local = p_ref[_R_WF:_R_WF + H, 0:H]                 # (32, 32) Linear(64,32) rows on x_local
    wf1_global = p_ref[_R_WF:_R_WF + H, H:2 * H]            # (32, 32) rows on x_global
    wf2 = p_ref[_R_WF:_R_WF + H, 2 * H:3 * H]               # (32, 32)
    w1 = p_ref[_R_ROWA:_R_ROWA + 1, 0:H]                    # (1, 32)  l1 weight (transposed)
    b1 = p_ref[_R_ROWA:_R_ROWA + 1, H:2 * H]                # (1, 32)  l1 bias
    bf1 = p_ref[_R_ROWA:_R_ROWA + 1, 2 * H:3 * H]           # (1, 32)
    bf2 = p_ref[_R_ROWB:_R_ROWB + 1, 0:H]                   # (1, 32)
    wf3 = p_ref[_R_ROWB:_R_ROWB + 1, H:2 * H]               # (1, 32)  Linear(32,1) weight as a row
    bf3 = p_ref[_R_ROWB:_R_ROWB + 1, 2 * H:2 * H + 1]       # (1, 1)

    # ---- fuse l1 (Linear(1,32)) with the GRU1 input projection (rank-1 affine map) ----
    # gi_t = (x*w1 + b1) @ W_ih1 + b_ih1 = x * (w1 @ W_ih1) + (b1 @ W_ih1 + b_ih1)
    a1 = jnp.dot(w1, w_ih1, preferred_element_type=f32)             # (1, 96)
    c1 = jnp.dot(b1, w_ih1, preferred_element_type=f32) + b_ih1     # (1, 96)

    w_hh1_bf = w_hh1.astype(bf16)                                   # loop-invariant cast
    xv = x_ref[...]                                                 # (N, N) payoff matrix, loaded once

    # ---- GRU1: batch = N matrix rows (sublanes), sequence = N columns ----
    h1 = jnp.zeros((n, H), f32)
    for t in range(n):                                              # short, fully unrolled
        gi = xv[:, t:t + 1] * a1 + c1                               # (N, 96) VPU broadcast (no MXU)
        gh = jnp.dot(h1.astype(bf16), w_hh1_bf,                     # (N, 96) recurrent matmul, bf16 MXU
                     preferred_element_type=f32) + b_hh1
        h1 = _gru_gates(gi, gh, h1)                                 # (N, 32), f32 state
    x_local = h1

    # ---- GRU2: batch = 1, sequence = the N row-hiddens produced by GRU1 ----
    gi2_all = jnp.dot(x_local.astype(bf16), w_ih2.astype(bf16),
                      preferred_element_type=f32) + b_ih2           # (N, 96) one batched matmul
    h2 = jnp.zeros((1, H), f32)
    for t in range(n):
        gh = jnp.dot(h2, w_hh2, preferred_element_type=f32) + b_hh2  # (1, 96); kept f32 (tiny, bounds drift)
        h2 = _gru_gates(gi2_all[t:t + 1, :], gh, h2)                 # (1, 32)
    x_global = h2

    # ---- final MLP: cat([x_local, x_global.repeat(N)], -1) @ Wf1 as split matmuls ----
    f1 = (jnp.dot(x_local, wf1_local, preferred_element_type=f32)
          + jnp.dot(x_global, wf1_global, preferred_element_type=f32)   # broadcast over N rows
          + bf1)
    f1 = jnp.maximum(f1, 0.0)
    f2 = jnp.maximum(jnp.dot(f1, wf2, preferred_element_type=f32) + bf2, 0.0)   # (N, 32)

    # Linear(32,1) as wf3 @ f2.T so the logits (and the store) are lane-dense (1, N).
    logits = jnp.dot(wf3, f2.T, preferred_element_type=f32) + bf3   # (1, N)

    # softmax over the N actions (lane axis); exact normalization.
    m = jnp.max(logits, axis=-1, keepdims=True)
    e = jnp.exp(logits - m)
    s = jnp.sum(e, axis=-1, keepdims=True)
    out_ref[...] = e / s                                            # (1, N)


def meta_solver_gru_forward(x, packed_slab):
    """x: (S, B, N, N). The torch module does x = x[0]; x1 = l1(...)[0], so only x[0, 0]
    feeds the GRUs and the output has shape (1, N)."""
    x0 = x[0, 0].astype(jnp.float32)          # (N, N) -- glue, mirrors the module's indexing
    N = x0.shape[-1]
    return pl.pallas_call(
        _meta_solver_gru_kernel,
        out_shape=jax.ShapeDtypeStruct((1, N), jnp.float32),
        grid=(1,),
        in_specs=[
            pl.BlockSpec((N, N), lambda i: (0, 0)),
            pl.BlockSpec(packed_slab.shape, lambda i: (0, 0)),
        ],
        out_specs=pl.BlockSpec((1, N), lambda i: (0, 0)),
        compiler_params=pltpu.CompilerParams(dimension_semantics=("arbitrary",)),
    )(x0, packed_slab)


def init_params(key):
    """Deterministic PyTorch-style uniform init; all weights stored transposed (in, out)."""
    def uniform(k, shape, fan_in):
        bound = 1.0 / float(np.sqrt(fan_in))
        return jax.random.uniform(k, shape, jnp.float32, -bound, bound)

    ks = jax.random.split(key, 16)
    return dict(
        # l1: Linear(1, 32)
        w1=uniform(ks[0], (1, H), 1), b1=uniform(ks[1], (1, H), 1),
        # gru1 / gru2: weight_{ih,hh} transposed to (in, 3H), gate order [r, z, n]
        w_ih1=uniform(ks[2], (H, 3 * H), H), w_hh1=uniform(ks[3], (H, 3 * H), H),
        b_ih1=uniform(ks[4], (1, 3 * H), H), b_hh1=uniform(ks[5], (1, 3 * H), H),
        w_ih2=uniform(ks[6], (H, 3 * H), H), w_hh2=uniform(ks[7], (H, 3 * H), H),
        b_ih2=uniform(ks[8], (1, 3 * H), H), b_hh2=uniform(ks[9], (1, 3 * H), H),
        # final: Linear(64,32) -> ReLU -> Linear(32,32) -> ReLU -> Linear(32,1)
        wf1=uniform(ks[10], (2 * H, H), 2 * H), bf1=uniform(ks[11], (1, H), 2 * H),
        wf2=uniform(ks[12], (H, H), H), bf2=uniform(ks[13], (1, H), H),
        wf3=uniform(ks[14], (H, 1), H), bf3=uniform(ks[15], (1, 1), H),
    )


def pack_params(p):
    """Pack all 23 tensors into ONE (168, 96) f32 slab -> a single parameter DMA."""
    gate_w = jnp.concatenate([p["w_ih1"], p["w_hh1"], p["w_ih2"], p["w_hh2"]], axis=0)   # (128, 96)
    gate_b = jnp.concatenate([p["b_ih1"], p["b_hh1"], p["b_ih2"], p["b_hh2"]], axis=0)   # (4, 96)
    wf_blk = jnp.concatenate([p["wf1"][:H, :], p["wf1"][H:, :], p["wf2"]], axis=1)       # (32, 96)
    row_a = jnp.concatenate([p["w1"], p["b1"], p["bf1"]], axis=1)                        # (1, 96)
    row_b = jnp.concatenate(
        [p["bf2"], p["wf3"].T, p["bf3"], jnp.zeros((1, H - 1), jnp.float32)], axis=1)    # (1, 96)
    slab = jnp.concatenate([gate_w, gate_b, wf_blk, row_a, row_b], axis=0)               # (166, 96)
    return jnp.pad(slab, ((0, _SLAB_ROWS - slab.shape[0]), (0, 0)))                      # (168, 96)


def reference_forward(x, p):
    """Pure-JAX f32 replica of the PyTorch forward (straightforward, unfused) for validation."""
    x0 = x[0, 0].astype(jnp.float32)                       # x[0] -> (B,N,N); l1(...)[0] keeps b=0
    N = x0.shape[-1]
    x1 = x0[..., None] * p["w1"][0] + p["b1"][0]           # (N, N, 32)

    def sigmoid(v):
        return 1.0 / (1.0 + jnp.exp(-v))

    def gru(x_seq, h0, w_ih, w_hh, b_ih, b_hh):
        h = h0
        for t in range(x_seq.shape[1]):
            gi = x_seq[:, t, :] @ w_ih + b_ih
            gh = h @ w_hh + b_hh
            r = sigmoid(gi[:, :H] + gh[:, :H])
            z = sigmoid(gi[:, H:2 * H] + gh[:, H:2 * H])
            nn_ = jnp.tanh(gi[:, 2 * H:] + r * gh[:, 2 * H:])
            h = (1.0 - z) * nn_ + z * h
        return h

    h1 = gru(x1, jnp.zeros((N, H), jnp.float32),
             p["w_ih1"], p["w_hh1"], p["b_ih1"], p["b_hh1"])            # (N, 32)  x_local
    h2 = gru(h1[None, :, :], jnp.zeros((1, H), jnp.float32),
             p["w_ih2"], p["w_hh2"], p["b_ih2"], p["b_hh2"])            # (1, 32)  x_global
    x_final = jnp.concatenate([h1, jnp.tile(h2, (N, 1))], axis=-1)      # (N, 64)
    f1 = jnp.maximum(x_final @ p["wf1"] + p["bf1"], 0.0)
    f2 = jnp.maximum(f1 @ p["wf2"] + p["bf2"], 0.0)
    logits = (f2 @ p["wf3"] + p["bf3"])[:, 0]                           # (N,)
    return jax.nn.softmax(logits)[None, :]                              # (1, N)


if __name__ == "__main__":
    key = jax.random.PRNGKey(0)
    kp, kx = jax.random.split(key)
    raw = init_params(kp)
    slab = pack_params(raw)

    B, N = 2, 8
    x = jax.random.normal(kx, (1, B, N, N), jnp.float32)   # module does x = x[0]

    out = meta_solver_gru_forward(x, slab)
    jax.block_until_ready(out)

    ref = reference_forward(x, raw)
    assert out.shape == (1, N)
    assert np.allclose(np.asarray(out).sum(-1), 1.0, atol=1e-3)
    # GRU1 recurrence runs with bf16 MXU operands (f32 accumulation); compare vs f32 ref at 5e-3.
    assert np.allclose(np.asarray(out), np.asarray(ref), atol=5e-3)
    print("KERNEL_OK")
</pallas_src>

<mosaic_0001>
module attributes {stable_mosaic.version = 11 : i64} {
  func.func @_meta_solver_gru_kernel(%arg0: i32, %arg1: memref<8x8xf32, #tpu.memory_space<vmem>>, %arg2: memref<168x96xf32, #tpu.memory_space<vmem>>, %arg3: memref<1x8xf32, #tpu.memory_space<vmem>>) attributes {dimension_semantics = [#tpu.dimension_semantics<arbitrary>], iteration_bounds = array<i64: 1>, scalar_prefetch = 0 : i64, scratch_operands = 0 : i64, tpu.core_type = #tpu.core_type<tc>, window_params = [{pipeline_mode = #tpu.pipeline_mode<synchronous>, transform_indices = @transform_0, window_bounds = array<i64: 8, 8>}, {pipeline_mode = #tpu.pipeline_mode<synchronous>, transform_indices = @transform_1, window_bounds = array<i64: 168, 96>}, {pipeline_mode = #tpu.pipeline_mode<synchronous>, transform_indices = @transform_2, window_bounds = array<i64: 1, 8>}]} {
    %c0 = arith.constant 0 : index
    %c0_0 = arith.constant 0 : index
    %0 = vector.load %arg2[%c0, %c0_0] : memref<168x96xf32, #tpu.memory_space<vmem>>, vector<32x96xf32>
    %c32 = arith.constant 32 : index
    %c0_1 = arith.constant 0 : index
    %1 = vector.load %arg2[%c32, %c0_1] : memref<168x96xf32, #tpu.memory_space<vmem>>, vector<32x96xf32>
    %c64 = arith.constant 64 : index
    %c0_2 = arith.constant 0 : index
    %2 = vector.load %arg2[%c64, %c0_2] : memref<168x96xf32, #tpu.memory_space<vmem>>, vector<32x96xf32>
    %c96 = arith.constant 96 : index
    %c0_3 = arith.constant 0 : index
    %3 = vector.load %arg2[%c96, %c0_3] : memref<168x96xf32, #tpu.memory_space<vmem>>, vector<32x96xf32>
    %c128 = arith.constant 128 : index
    %c0_4 = arith.constant 0 : index
    %4 = vector.load %arg2[%c128, %c0_4] : memref<168x96xf32, #tpu.memory_space<vmem>>, vector<1x96xf32>
    %c129 = arith.constant 129 : index
    %c0_5 = arith.constant 0 : index
    %5 = vector.load %arg2[%c129, %c0_5] : memref<168x96xf32, #tpu.memory_space<vmem>>, vector<1x96xf32>
    %c130 = arith.constant 130 : index
    %c0_6 = arith.constant 0 : index
    %6 = vector.load %arg2[%c130, %c0_6] : memref<168x96xf32, #tpu.memory_space<vmem>>, vector<1x96xf32>
    %c131 = arith.constant 131 : index
    %c0_7 = arith.constant 0 : index
    %7 = vector.load %arg2[%c131, %c0_7] : memref<168x96xf32, #tpu.memory_space<vmem>>, vector<1x96xf32>
    %c132 = arith.constant 132 : index
    %c0_8 = arith.constant 0 : index
    %8 = vector.load %arg2[%c132, %c0_8] : memref<168x96xf32, #tpu.memory_space<vmem>>, vector<32x32xf32>
    %c132_9 = arith.constant 132 : index
    %c32_10 = arith.constant 32 : index
    %9 = vector.load %arg2[%c132_9, %c32_10] : memref<168x96xf32, #tpu.memory_space<vmem>>, vector<32x32xf32>
    %c132_11 = arith.constant 132 : index
    %c64_12 = arith.constant 64 : index
    %10 = vector.load %arg2[%c132_11, %c64_12] : memref<168x96xf32, #tpu.memory_space<vmem>>, vector<32x32xf32>
    %c164 = arith.constant 164 : index
    %c0_13 = arith.constant 0 : index
    %11 = vector.load %arg2[%c164, %c0_13] : memref<168x96xf32, #tpu.memory_space<vmem>>, vector<1x32xf32>
    %c164_14 = arith.constant 164 : index
    %c32_15 = arith.constant 32 : index
    %12 = vector.load %arg2[%c164_14, %c32_15] : memref<168x96xf32, #tpu.memory_space<vmem>>, vector<1x32xf32>
    %c164_16 = arith.constant 164 : index
    %c64_17 = arith.constant 64 : index
    %13 = vector.load %arg2[%c164_16, %c64_17] : memref<168x96xf32, #tpu.memory_space<vmem>>, vector<1x32xf32>
    %c165 = arith.constant 165 : index
    %c0_18 = arith.constant 0 : index
    %14 = vector.load %arg2[%c165, %c0_18] : memref<168x96xf32, #tpu.memory_space<vmem>>, vector<1x32xf32>
    %c165_19 = arith.constant 165 : index
    %c32_20 = arith.constant 32 : index
    %15 = vector.load %arg2[%c165_19, %c32_20] : memref<168x96xf32, #tpu.memory_space<vmem>>, vector<1x32xf32>
    %c165_21 = arith.constant 165 : index
    %c64_22 = arith.constant 64 : index
    %16 = vector.load %arg2[%c165_21, %c64_22] : memref<168x96xf32, #tpu.memory_space<vmem>>, vector<1x1xf32>
    %cst = arith.constant dense<0.000000e+00> : vector<1x96xf32>
    %17 = tpu.matmul %11, %0, %cst {dimension_numbers = #tpu.dot_dimension_numbers<[1], [0], [0], [1], [0, 0, 1, 1], [], []>} : vector<1x32xf32>, vector<32x96xf32>, vector<1x96xf32> -> vector<1x96xf32>
    %cst_23 = arith.constant dense<0.000000e+00> : vector<1x96xf32>
    %18 = tpu.matmul %12, %0, %cst_23 {dimension_numbers = #tpu.dot_dimension_numbers<[1], [0], [0], [1], [0, 0, 1, 1], [], []>} : vector<1x32xf32>, vector<32x96xf32>, vector<1x96xf32> -> vector<1x96xf32>
    %19 = arith.addf %18, %4 : vector<1x96xf32>
    %20 = arith.truncf %1 : vector<32x96xf32> to vector<32x96xbf16>
    %c0_24 = arith.constant 0 : index
    %c0_25 = arith.constant 0 : index
    %21 = vector.load %arg1[%c0_24, %c0_25] : memref<8x8xf32, #tpu.memory_space<vmem>>, vector<8x8xf32>
    %cst_26 = arith.constant 0.000000e+00 : f32
    %22 = vector.broadcast %cst_26 : f32 to vector<8x32xf32>
    %23 = vector.extract_strided_slice %21 {offsets = [0, 0], sizes = [8, 1], strides = [1, 1]} : vector<8x8xf32> to vector<8x1xf32>
    %24 = vector.broadcast %23 : vector<8x1xf32> to vector<8x96xf32>
    %25 = vector.broadcast %17 : vector<1x96xf32> to vector<8x96xf32>
    %26 = arith.mulf %24, %25 : vector<8x96xf32>
    %27 = vector.broadcast %19 : vector<1x96xf32> to vector<8x96xf32>
    %28 = arith.addf %26, %27 : vector<8x96xf32>
    %29 = arith.truncf %22 : vector<8x32xf32> to vector<8x32xbf16>
    %cst_27 = arith.constant dense<0.000000e+00> : vector<8x96xf32>
    %30 = tpu.matmul %29, %20, %cst_27 {dimension_numbers = #tpu.dot_dimension_numbers<[1], [0], [0], [1], [0, 0, 1, 1], [], []>} : vector<8x32xbf16>, vector<32x96xbf16>, vector<8x96xf32> -> vector<8x96xf32>
    %31 = vector.broadcast %5 : vector<1x96xf32> to vector<8x96xf32>
    %32 = arith.addf %30, %31 : vector<8x96xf32>
    %33 = vector.extract_strided_slice %28 {offsets = [0, 0], sizes = [8, 64], strides = [1, 1]} : vector<8x96xf32> to vector<8x64xf32>
    %34 = vector.extract_strided_slice %32 {offsets = [0, 0], sizes = [8, 64], strides = [1, 1]} : vector<8x96xf32> to vector<8x64xf32>
    %35 = arith.addf %33, %34 : vector<8x64xf32>
    %cst_28 = arith.constant 5.000000e-01 : f32
    %36 = vector.broadcast %cst_28 : f32 to vector<8x64xf32>
    %37 = arith.mulf %36, %35 : vector<8x64xf32>
    %38 = math.tanh %37 : vector<8x64xf32>
    %cst_29 = arith.constant 5.000000e-01 : f32
    %39 = vector.broadcast %cst_29 : f32 to vector<8x64xf32>
    %40 = arith.mulf %39, %38 : vector<8x64xf32>
    %cst_30 = arith.constant 5.000000e-01 : f32
    %41 = vector.broadcast %cst_30 : f32 to vector<8x64xf32>
    %42 = arith.addf %40, %41 : vector<8x64xf32>
    %43 = vector.extract_strided_slice %42 {offsets = [0, 0], sizes = [8, 32], strides = [1, 1]} : vector<8x64xf32> to vector<8x32xf32>
    %44 = vector.extract_strided_slice %42 {offsets = [0, 32], sizes = [8, 32], strides = [1, 1]} : vector<8x64xf32> to vector<8x32xf32>
    %45 = vector.extract_strided_slice %28 {offsets = [0, 64], sizes = [8, 32], strides = [1, 1]} : vector<8x96xf32> to vector<8x32xf32>
    %46 = vector.extract_strided_slice %32 {offsets = [0, 64], sizes = [8, 32], strides = [1, 1]} : vector<8x96xf32> to vector<8x32xf32>
    %47 = arith.mulf %43, %46 : vector<8x32xf32>
    %48 = arith.addf %45, %47 : vector<8x32xf32>
    %49 = math.tanh %48 : vector<8x32xf32>
    %cst_31 = arith.constant 1.000000e+00 : f32
    %50 = vector.broadcast %cst_31 : f32 to vector<8x32xf32>
    %51 = arith.subf %50, %44 : vector<8x32xf32>
    %52 = arith.mulf %51, %49 : vector<8x32xf32>
    %53 = arith.mulf %44, %22 : vector<8x32xf32>
    %54 = arith.addf %52, %53 : vector<8x32xf32>
    %55 = vector.extract_strided_slice %21 {offsets = [0, 1], sizes = [8, 1], strides = [1, 1]} : vector<8x8xf32> to vector<8x1xf32>
    %56 = vector.broadcast %55 : vector<8x1xf32> to vector<8x96xf32>
    %57 = vector.broadcast %17 : vector<1x96xf32> to vector<8x96xf32>
    %58 = arith.mulf %56, %57 : vector<8x96xf32>
    %59 = vector.broadcast %19 : vector<1x96xf32> to vector<8x96xf32>
    %60 = arith.addf %58, %59 : vector<8x96xf32>
    %61 = arith.truncf %54 : vector<8x32xf32> to vector<8x32xbf16>
    %cst_32 = arith.constant dense<0.000000e+00> : vector<8x96xf32>
    %62 = tpu.matmul %61, %20, %cst_32 {dimension_numbers = #tpu.dot_dimension_numbers<[1], [0], [0], [1], [0, 0, 1, 1], [], []>} : vector<8x32xbf16>, vector<32x96xbf16>, vector<8x96xf32> -> vector<8x96xf32>
    %63 = vector.broadcast %5 : vector<1x96xf32> to vector<8x96xf32>
    %64 = arith.addf %62, %63 : vector<8x96xf32>
    %65 = vector.extract_strided_slice %60 {offsets = [0, 0], sizes = [8, 64], strides = [1, 1]} : vector<8x96xf32> to vector<8x64xf32>
    %66 = vector.extract_strided_slice %64 {offsets = [0, 0], sizes = [8, 64], strides = [1, 1]} : vector<8x96xf32> to vector<8x64xf32>
    %67 = arith.addf %65, %66 : vector<8x64xf32>
    %cst_33 = arith.constant 5.000000e-01 : f32
    %68 = vector.broadcast %cst_33 : f32 to vector<8x64xf32>
    %69 = arith.mulf %68, %67 : vector<8x64xf32>
    %70 = math.tanh %69 : vector<8x64xf32>
    %cst_34 = arith.constant 5.000000e-01 : f32
    %71 = vector.broadcast %cst_34 : f32 to vector<8x64xf32>
    %72 = arith.mulf %71, %70 : vector<8x64xf32>
    %cst_35 = arith.constant 5.000000e-01 : f32
    %73 = vector.broadcast %cst_35 : f32 to vector<8x64xf32>
    %74 = arith.addf %72, %73 : vector<8x64xf32>
    %75 = vector.extract_strided_slice %74 {offsets = [0, 0], sizes = [8, 32], strides = [1, 1]} : vector<8x64xf32> to vector<8x32xf32>
    %76 = vector.extract_strided_slice %74 {offsets = [0, 32], sizes = [8, 32], strides = [1, 1]} : vector<8x64xf32> to vector<8x32xf32>
    %77 = vector.extract_strided_slice %60 {offsets = [0, 64], sizes = [8, 32], strides = [1, 1]} : vector<8x96xf32> to vector<8x32xf32>
    %78 = vector.extract_strided_slice %64 {offsets = [0, 64], sizes = [8, 32], strides = [1, 1]} : vector<8x96xf32> to vector<8x32xf32>
    %79 = arith.mulf %75, %78 : vector<8x32xf32>
    %80 = arith.addf %77, %79 : vector<8x32xf32>
    %81 = math.tanh %80 : vector<8x32xf32>
    %cst_36 = arith.constant 1.000000e+00 : f32
    %82 = vector.broadcast %cst_36 : f32 to vector<8x32xf32>
    %83 = arith.subf %82, %76 : vector<8x32xf32>
    %84 = arith.mulf %83, %81 : vector<8x32xf32>
    %85 = arith.mulf %76, %54 : vector<8x32xf32>
    %86 = arith.addf %84, %85 : vector<8x32xf32>
    %87 = vector.extract_strided_slice %21 {offsets = [0, 2], sizes = [8, 1], strides = [1, 1]} : vector<8x8xf32> to vector<8x1xf32>
    %88 = vector.broadcast %87 : vector<8x1xf32> to vector<8x96xf32>
    %89 = vector.broadcast %17 : vector<1x96xf32> to vector<8x96xf32>
    %90 = arith.mulf %88, %89 : vector<8x96xf32>
    %91 = vector.broadcast %19 : vector<1x96xf32> to vector<8x96xf32>
    %92 = arith.addf %90, %91 : vector<8x96xf32>
    %93 = arith.truncf %86 : vector<8x32xf32> to vector<8x32xbf16>
    %cst_37 = arith.constant dense<0.000000e+00> : vector<8x96xf32>
    %94 = tpu.matmul %93, %20, %cst_37 {dimension_numbers = #tpu.dot_dimension_numbers<[1], [0], [0], [1], [0, 0, 1, 1], [], []>} : vector<8x32xbf16>, vector<32x96xbf16>, vector<8x96xf32> -> vector<8x96xf32>
    %95 = vector.broadcast %5 : vector<1x96xf32> to vector<8x96xf32>
    %96 = arith.addf %94, %95 : vector<8x96xf32>
    %97 = vector.extract_strided_slice %92 {offsets = [0, 0], sizes = [8, 64], strides = [1, 1]} : vector<8x96xf32> to vector<8x64xf32>
    %98 = vector.extract_strided_slice %96 {offsets = [0, 0], sizes = [8, 64], strides = [1, 1]} : vector<8x96xf32> to vector<8x64xf32>
    %99 = arith.addf %97, %98 : vector<8x64xf32>
    %cst_38 = arith.constant 5.000000e-01 : f32
    %100 = vector.broadcast %cst_38 : f32 to vector<8x64xf32>
    %101 = arith.mulf %100, %99 : vector<8x64xf32>
    %102 = math.tanh %101 : vector<8x64xf32>
    %cst_39 = arith.constant 5.000000e-01 : f32
    %103 = vector.broadcast %cst_39 : f32 to vector<8x64xf32>
    %104 = arith.mulf %103, %102 : vector<8x64xf32>
    %cst_40 = arith.constant 5.000000e-01 : f32
    %105 = vector.broadcast %cst_40 : f32 to vector<8x64xf32>
    %106 = arith.addf %104, %105 : vector<8x64xf32>
    %107 = vector.extract_strided_slice %106 {offsets = [0, 0], sizes = [8, 32], strides = [1, 1]} : vector<8x64xf32> to vector<8x32xf32>
    %108 = vector.extract_strided_slice %106 {offsets = [0, 32], sizes = [8, 32], strides = [1, 1]} : vector<8x64xf32> to vector<8x32xf32>
    %109 = vector.extract_strided_slice %92 {offsets = [0, 64], sizes = [8, 32], strides = [1, 1]} : vector<8x96xf32> to vector<8x32xf32>
    %110 = vector.extract_strided_slice %96 {offsets = [0, 64], sizes = [8, 32], strides = [1, 1]} : vector<8x96xf32> to vector<8x32xf32>
    %111 = arith.mulf %107, %110 : vector<8x32xf32>
    %112 = arith.addf %109, %111 : vector<8x32xf32>
    %113 = math.tanh %112 : vector<8x32xf32>
    %cst_41 = arith.constant 1.000000e+00 : f32
    %114 = vector.broadcast %cst_41 : f32 to vector<8x32xf32>
    %115 = arith.subf %114, %108 : vector<8x32xf32>
    %116 = arith.mulf %115, %113 : vector<8x32xf32>
    %117 = arith.mulf %108, %86 : vector<8x32xf32>
    %118 = arith.addf %116, %117 : vector<8x32xf32>
    %119 = vector.extract_strided_slice %21 {offsets = [0, 3], sizes = [8, 1], strides = [1, 1]} : vector<8x8xf32> to vector<8x1xf32>
    %120 = vector.broadcast %119 : vector<8x1xf32> to vector<8x96xf32>
    %121 = vector.broadcast %17 : vector<1x96xf32> to vector<8x96xf32>
    %122 = arith.mulf %120, %121 : vector<8x96xf32>
    %123 = vector.broadcast %19 : vector<1x96xf32> to vector<8x96xf32>
    %124 = arith.addf %122, %123 : vector<8x96xf32>
    %125 = arith.truncf %118 : vector<8x32xf32> to vector<8x32xbf16>
    %cst_42 = arith.constant dense<0.000000e+00> : vector<8x96xf32>
    %126 = tpu.matmul %125, %20, %cst_42 {dimension_numbers = #tpu.dot_dimension_numbers<[1], [0], [0], [1], [0, 0, 1, 1], [], []>} : vector<8x32xbf16>, vector<32x96xbf16>, vector<8x96xf32> -> vector<8x96xf32>
    %127 = vector.broadcast %5 : vector<1x96xf32> to vector<8x96xf32>
    %128 = arith.addf %126, %127 : vector<8x96xf32>
    %129 = vector.extract_strided_slice %124 {offsets = [0, 0], sizes = [8, 64], strides = [1, 1]} : vector<8x96xf32> to vector<8x64xf32>
    %130 = vector.extract_strided_slice %128 {offsets = [0, 0], sizes = [8, 64], strides = [1, 1]} : vector<8x96xf32> to vector<8x64xf32>
    %131 = arith.addf %129, %130 : vector<8x64xf32>
    %cst_43 = arith.constant 5.000000e-01 : f32
    %132 = vector.broadcast %cst_43 : f32 to vector<8x64xf32>
    %133 = arith.mulf %132, %131 : vector<8x64xf32>
    %134 = math.tanh %133 : vector<8x64xf32>
    %cst_44 = arith.constant 5.000000e-01 : f32
    %135 = vector.broadcast %cst_44 : f32 to vector<8x64xf32>
    %136 = arith.mulf %135, %134 : vector<8x64xf32>
    %cst_45 = arith.constant 5.000000e-01 : f32
    %137 = vector.broadcast %cst_45 : f32 to vector<8x64xf32>
    %138 = arith.addf %136, %137 : vector<8x64xf32>
    %139 = vector.extract_strided_slice %138 {offsets = [0, 0], sizes = [8, 32], strides = [1, 1]} : vector<8x64xf32> to vector<8x32xf32>
    %140 = vector.extract_strided_slice %138 {offsets = [0, 32], sizes = [8, 32], strides = [1, 1]} : vector<8x64xf32> to vector<8x32xf32>
    %141 = vector.extract_strided_slice %124 {offsets = [0, 64], sizes = [8, 32], strides = [1, 1]} : vector<8x96xf32> to vector<8x32xf32>
    %142 = vector.extract_strided_slice %128 {offsets = [0, 64], sizes = [8, 32], strides = [1, 1]} : vector<8x96xf32> to vector<8x32xf32>
    %143 = arith.mulf %139, %142 : vector<8x32xf32>
    %144 = arith.addf %141, %143 : vector<8x32xf32>
    %145 = math.tanh %144 : vector<8x32xf32>
    %cst_46 = arith.constant 1.000000e+00 : f32
    %146 = vector.broadcast %cst_46 : f32 to vector<8x32xf32>
    %147 = arith.subf %146, %140 : vector<8x32xf32>
    %148 = arith.mulf %147, %145 : vector<8x32xf32>
    %149 = arith.mulf %140, %118 : vector<8x32xf32>
    %150 = arith.addf %148, %149 : vector<8x32xf32>
    %151 = vector.extract_strided_slice %21 {offsets = [0, 4], sizes = [8, 1], strides = [1, 1]} : vector<8x8xf32> to vector<8x1xf32>
    %152 = vector.broadcast %151 : vector<8x1xf32> to vector<8x96xf32>
    %153 = vector.broadcast %17 : vector<1x96xf32> to vector<8x96xf32>
    %154 = arith.mulf %152, %153 : vector<8x96xf32>
    %155 = vector.broadcast %19 : vector<1x96xf32> to vector<8x96xf32>
    %156 = arith.addf %154, %155 : vector<8x96xf32>
    %157 = arith.truncf %150 : vector<8x32xf32> to vector<8x32xbf16>
    %cst_47 = arith.constant dense<0.000000e+00> : vector<8x96xf32>
    %158 = tpu.matmul %157, %20, %cst_47 {dimension_numbers = #tpu.dot_dimension_numbers<[1], [0], [0], [1], [0, 0, 1, 1], [], []>} : vector<8x32xbf16>, vector<32x96xbf16>, vector<8x96xf32> -> vector<8x96xf32>
    %159 = vector.broadcast %5 : vector<1x96xf32> to vector<8x96xf32>
    %160 = arith.addf %158, %159 : vector<8x96xf32>
    %161 = vector.extract_strided_slice %156 {offsets = [0, 0], sizes = [8, 64], strides = [1, 1]} : vector<8x96xf32> to vector<8x64xf32>
    %162 = vector.extract_strided_slice %160 {offsets = [0, 0], sizes = [8, 64], strides = [1, 1]} : vector<8x96xf32> to vector<8x64xf32>
    %163 = arith.addf %161, %162 : vector<8x64xf32>
    %cst_48 = arith.constant 5.000000e-01 : f32
    %164 = vector.broadcast %cst_48 : f32 to vector<8x64xf32>
    %165 = arith.mulf %164, %163 : vector<8x64xf32>
    %166 = math.tanh %165 : vector<8x64xf32>
    %cst_49 = arith.constant 5.000000e-01 : f32
    %167 = vector.broadcast %cst_49 : f32 to vector<8x64xf32>
    %168 = arith.mulf %167, %166 : vector<8x64xf32>
    %cst_50 = arith.constant 5.000000e-01 : f32
    %169 = vector.broadcast %cst_50 : f32 to vector<8x64xf32>
    %170 = arith.addf %168, %169 : vector<8x64xf32>
    %171 = vector.extract_strided_slice %170 {offsets = [0, 0], sizes = [8, 32], strides = [1, 1]} : vector<8x64xf32> to vector<8x32xf32>
    %172 = vector.extract_strided_slice %170 {offsets = [0, 32], sizes = [8, 32], strides = [1, 1]} : vector<8x64xf32> to vector<8x32xf32>
    %173 = vector.extract_strided_slice %156 {offsets = [0, 64], sizes = [8, 32], strides = [1, 1]} : vector<8x96xf32> to vector<8x32xf32>
    %174 = vector.extract_strided_slice %160 {offsets = [0, 64], sizes = [8, 32], strides = [1, 1]} : vector<8x96xf32> to vector<8x32xf32>
    %175 = arith.mulf %171, %174 : vector<8x32xf32>
    %176 = arith.addf %173, %175 : vector<8x32xf32>
    %177 = math.tanh %176 : vector<8x32xf32>
    %cst_51 = arith.constant 1.000000e+00 : f32
    %178 = vector.broadcast %cst_51 : f32 to vector<8x32xf32>
    %179 = arith.subf %178, %172 : vector<8x32xf32>
    %180 = arith.mulf %179, %177 : vector<8x32xf32>
    %181 = arith.mulf %172, %150 : vector<8x32xf32>
    %182 = arith.addf %180, %181 : vector<8x32xf32>
    %183 = vector.extract_strided_slice %21 {offsets = [0, 5], sizes = [8, 1], strides = [1, 1]} : vector<8x8xf32> to vector<8x1xf32>
    %184 = vector.broadcast %183 : vector<8x1xf32> to vector<8x96xf32>
    %185 = vector.broadcast %17 : vector<1x96xf32> to vector<8x96xf32>
    %186 = arith.mulf %184, %185 : vector<8x96xf32>
    %187 = vector.broadcast %19 : vector<1x96xf32> to vector<8x96xf32>
    %188 = arith.addf %186, %187 : vector<8x96xf32>
    %189 = arith.truncf %182 : vector<8x32xf32> to vector<8x32xbf16>
    %cst_52 = arith.constant dense<0.000000e+00> : vector<8x96xf32>
    %190 = tpu.matmul %189, %20, %cst_52 {dimension_numbers = #tpu.dot_dimension_numbers<[1], [0], [0], [1], [0, 0, 1, 1], [], []>} : vector<8x32xbf16>, vector<32x96xbf16>, vector<8x96xf32> -> vector<8x96xf32>
    %191 = vector.broadcast %5 : vector<1x96xf32> to vector<8x96xf32>
    %192 = arith.addf %190, %191 : vector<8x96xf32>
    %193 = vector.extract_strided_slice %188 {offsets = [0, 0], sizes = [8, 64], strides = [1, 1]} : vector<8x96xf32> to vector<8x64xf32>
    %194 = vector.extract_strided_slice %192 {offsets = [0, 0], sizes = [8, 64], strides = [1, 1]} : vector<8x96xf32> to vector<8x64xf32>
    %195 = arith.addf %193, %194 : vector<8x64xf32>
    %cst_53 = arith.constant 5.000000e-01 : f32
    %196 = vector.broadcast %cst_53 : f32 to vector<8x64xf32>
    %197 = arith.mulf %196, %195 : vector<8x64xf32>
    %198 = math.tanh %197 : vector<8x64xf32>
    %cst_54 = arith.constant 5.000000e-01 : f32
    %199 = vector.broadcast %cst_54 : f32 to vector<8x64xf32>
    %200 = arith.mulf %199, %198 : vector<8x64xf32>
    %cst_55 = arith.constant 5.000000e-01 : f32
    %201 = vector.broadcast %cst_55 : f32 to vector<8x64xf32>
    %202 = arith.addf %200, %201 : vector<8x64xf32>
    %203 = vector.extract_strided_slice %202 {offsets = [0, 0], sizes = [8, 32], strides = [1, 1]} : vector<8x64xf32> to vector<8x32xf32>
    %204 = vector.extract_strided_slice %202 {offsets = [0, 32], sizes = [8, 32], strides = [1, 1]} : vector<8x64xf32> to vector<8x32xf32>
    %205 = vector.extract_strided_slice %188 {offsets = [0, 64], sizes = [8, 32], strides = [1, 1]} : vector<8x96xf32> to vector<8x32xf32>
    %206 = vector.extract_strided_slice %192 {offsets = [0, 64], sizes = [8, 32], strides = [1, 1]} : vector<8x96xf32> to vector<8x32xf32>
    %207 = arith.mulf %203, %206 : vector<8x32xf32>
    %208 = arith.addf %205, %207 : vector<8x32xf32>
    %209 = math.tanh %208 : vector<8x32xf32>
    %cst_56 = arith.constant 1.000000e+00 : f32
    %210 = vector.broadcast %cst_56 : f32 to vector<8x32xf32>
    %211 = arith.subf %210, %204 : vector<8x32xf32>
    %212 = arith.mulf %211, %209 : vector<8x32xf32>
    %213 = arith.mulf %204, %182 : vector<8x32xf32>
    %214 = arith.addf %212, %213 : vector<8x32xf32>
    %215 = vector.extract_strided_slice %21 {offsets = [0, 6], sizes = [8, 1], strides = [1, 1]} : vector<8x8xf32> to vector<8x1xf32>
    %216 = vector.broadcast %215 : vector<8x1xf32> to vector<8x96xf32>
    %217 = vector.broadcast %17 : vector<1x96xf32> to vector<8x96xf32>
    %218 = arith.mulf %216, %217 : vector<8x96xf32>
    %219 = vector.broadcast %19 : vector<1x96xf32> to vector<8x96xf32>
    %220 = arith.addf %218, %219 : vector<8x96xf32>
    %221 = arith.truncf %214 : vector<8x32xf32> to vector<8x32xbf16>
    %cst_57 = arith.constant dense<0.000000e+00> : vector<8x96xf32>
    %222 = tpu.matmul %221, %20, %cst_57 {dimension_numbers = #tpu.dot_dimension_numbers<[1], [0], [0], [1], [0, 0, 1, 1], [], []>} : vector<8x32xbf16>, vector<32x96xbf16>, vector<8x96xf32> -> vector<8x96xf32>
    %223 = vector.broadcast %5 : vector<1x96xf32> to vector<8x96xf32>
    %224 = arith.addf %222, %223 : vector<8x96xf32>
    %225 = vector.extract_strided_slice %220 {offsets = [0, 0], sizes = [8, 64], strides = [1, 1]} : vector<8x96xf32> to vector<8x64xf32>
    %226 = vector.extract_strided_slice %224 {offsets = [0, 0], sizes = [8, 64], strides = [1, 1]} : vector<8x96xf32> to vector<8x64xf32>
    %227 = arith.addf %225, %226 : vector<8x64xf32>
    %cst_58 = arith.constant 5.000000e-01 : f32
    %228 = vector.broadcast %cst_58 : f32 to vector<8x64xf32>
    %229 = arith.mulf %228, %227 : vector<8x64xf32>
    %230 = math.tanh %229 : vector<8x64xf32>
    %cst_59 = arith.constant 5.000000e-01 : f32
    %231 = vector.broadcast %cst_59 : f32 to vector<8x64xf32>
    %232 = arith.mulf %231, %230 : vector<8x64xf32>
    %cst_60 = arith.constant 5.000000e-01 : f32
    %233 = vector.broadcast %cst_60 : f32 to vector<8x64xf32>
    %234 = arith.addf %232, %233 : vector<8x64xf32>
    %235 = vector.extract_strided_slice %234 {offsets = [0, 0], sizes = [8, 32], strides = [1, 1]} : vector<8x64xf32> to vector<8x32xf32>
    %236 = vector.extract_strided_slice %234 {offsets = [0, 32], sizes = [8, 32], strides = [1, 1]} : vector<8x64xf32> to vector<8x32xf32>
    %237 = vector.extract_strided_slice %220 {offsets = [0, 64], sizes = [8, 32], strides = [1, 1]} : vector<8x96xf32> to vector<8x32xf32>
    %238 = vector.extract_strided_slice %224 {offsets = [0, 64], sizes = [8, 32], strides = [1, 1]} : vector<8x96xf32> to vector<8x32xf32>
    %239 = arith.mulf %235, %238 : vector<8x32xf32>
    %240 = arith.addf %237, %239 : vector<8x32xf32>
    %241 = math.tanh %240 : vector<8x32xf32>
    %cst_61 = arith.constant 1.000000e+00 : f32
    %242 = vector.broadcast %cst_61 : f32 to vector<8x32xf32>
    %243 = arith.subf %242, %236 : vector<8x32xf32>
    %244 = arith.mulf %243, %241 : vector<8x32xf32>
    %245 = arith.mulf %236, %214 : vector<8x32xf32>
    %246 = arith.addf %244, %245 : vector<8x32xf32>
    %247 = vector.extract_strided_slice %21 {offsets = [0, 7], sizes = [8, 1], strides = [1, 1]} : vector<8x8xf32> to vector<8x1xf32>
    %248 = vector.broadcast %247 : vector<8x1xf32> to vector<8x96xf32>
    %249 = vector.broadcast %17 : vector<1x96xf32> to vector<8x96xf32>
    %250 = arith.mulf %248, %249 : vector<8x96xf32>
    %251 = vector.broadcast %19 : vector<1x96xf32> to vector<8x96xf32>
    %252 = arith.addf %250, %251 : vector<8x96xf32>
    %253 = arith.truncf %246 : vector<8x32xf32> to vector<8x32xbf16>
    %cst_62 = arith.constant dense<0.000000e+00> : vector<8x96xf32>
    %254 = tpu.matmul %253, %20, %cst_62 {dimension_numbers = #tpu.dot_dimension_numbers<[1], [0], [0], [1], [0, 0, 1, 1], [], []>} : vector<8x32xbf16>, vector<32x96xbf16>, vector<8x96xf32> -> vector<8x96xf32>
    %255 = vector.broadcast %5 : vector<1x96xf32> to vector<8x96xf32>
    %256 = arith.addf %254, %255 : vector<8x96xf32>
    %257 = vector.extract_strided_slice %252 {offsets = [0, 0], sizes = [8, 64], strides = [1, 1]} : vector<8x96xf32> to vector<8x64xf32>
    %258 = vector.extract_strided_slice %256 {offsets = [0, 0], sizes = [8, 64], strides = [1, 1]} : vector<8x96xf32> to vector<8x64xf32>
    %259 = arith.addf %257, %258 : vector<8x64xf32>
    %cst_63 = arith.constant 5.000000e-01 : f32
    %260 = vector.broadcast %cst_63 : f32 to vector<8x64xf32>
    %261 = arith.mulf %260, %259 : vector<8x64xf32>
    %262 = math.tanh %261 : vector<8x64xf32>
    %cst_64 = arith.constant 5.000000e-01 : f32
    %263 = vector.broadcast %cst_64 : f32 to vector<8x64xf32>
    %264 = arith.mulf %263, %262 : vector<8x64xf32>
    %cst_65 = arith.constant 5.000000e-01 : f32
    %265 = vector.broadcast %cst_65 : f32 to vector<8x64xf32>
    %266 = arith.addf %264, %265 : vector<8x64xf32>
    %267 = vector.extract_strided_slice %266 {offsets = [0, 0], sizes = [8, 32], strides = [1, 1]} : vector<8x64xf32> to vector<8x32xf32>
    %268 = vector.extract_strided_slice %266 {offsets = [0, 32], sizes = [8, 32], strides = [1, 1]} : vector<8x64xf32> to vector<8x32xf32>
    %269 = vector.extract_strided_slice %252 {offsets = [0, 64], sizes = [8, 32], strides = [1, 1]} : vector<8x96xf32> to vector<8x32xf32>
    %270 = vector.extract_strided_slice %256 {offsets = [0, 64], sizes = [8, 32], strides = [1, 1]} : vector<8x96xf32> to vector<8x32xf32>
    %271 = arith.mulf %267, %270 : vector<8x32xf32>
    %272 = arith.addf %269, %271 : vector<8x32xf32>
    %273 = math.tanh %272 : vector<8x32xf32>
    %cst_66 = arith.constant 1.000000e+00 : f32
    %274 = vector.broadcast %cst_66 : f32 to vector<8x32xf32>
    %275 = arith.subf %274, %268 : vector<8x32xf32>
    %276 = arith.mulf %275, %273 : vector<8x32xf32>
    %277 = arith.mulf %268, %246 : vector<8x32xf32>
    %278 = arith.addf %276, %277 : vector<8x32xf32>
    %279 = arith.truncf %278 : vector<8x32xf32> to vector<8x32xbf16>
    %280 = arith.truncf %2 : vector<32x96xf32> to vector<32x96xbf16>
    %cst_67 = arith.constant dense<0.000000e+00> : vector<8x96xf32>
    %281 = tpu.matmul %279, %280, %cst_67 {dimension_numbers = #tpu.dot_dimension_numbers<[1], [0], [0], [1], [0, 0, 1, 1], [], []>} : vector<8x32xbf16>, vector<32x96xbf16>, vector<8x96xf32> -> vector<8x96xf32>
    %282 = vector.broadcast %6 : vector<1x96xf32> to vector<8x96xf32>
    %283 = arith.addf %281, %282 : vector<8x96xf32>
    %cst_68 = arith.constant 0.000000e+00 : f32
    %284 = vector.broadcast %cst_68 : f32 to vector<1x32xf32>
    %cst_69 = arith.constant dense<0.000000e+00> : vector<1x96xf32>
    %285 = tpu.matmul %284, %3, %cst_69 {dimension_numbers = #tpu.dot_dimension_numbers<[1], [0], [0], [1], [0, 0, 1, 1], [], []>} : vector<1x32xf32>, vector<32x96xf32>, vector<1x96xf32> -> vector<1x96xf32>
    %286 = arith.addf %285, %7 : vector<1x96xf32>
    %287 = vector.extract_strided_slice %283 {offsets = [0, 0], sizes = [1, 96], strides = [1, 1]} : vector<8x96xf32> to vector<1x96xf32>
    %288 = vector.extract_strided_slice %287 {offsets = [0, 0], sizes = [1, 64], strides = [1, 1]} : vector<1x96xf32> to vector<1x64xf32>
    %289 = vector.extract_strided_slice %286 {offsets = [0, 0], sizes = [1, 64], strides = [1, 1]} : vector<1x96xf32> to vector<1x64xf32>
    %290 = arith.addf %288, %289 : vector<1x64xf32>
    %cst_70 = arith.constant 5.000000e-01 : f32
    %291 = vector.broadcast %cst_70 : f32 to vector<1x64xf32>
    %292 = arith.mulf %291, %290 : vector<1x64xf32>
    %293 = math.tanh %292 : vector<1x64xf32>
    %cst_71 = arith.constant 5.000000e-01 : f32
    %294 = vector.broadcast %cst_71 : f32 to vector<1x64xf32>
    %295 = arith.mulf %294, %293 : vector<1x64xf32>
    %cst_72 = arith.constant 5.000000e-01 : f32
    %296 = vector.broadcast %cst_72 : f32 to vector<1x64xf32>
    %297 = arith.addf %295, %296 : vector<1x64xf32>
    %298 = vector.extract_strided_slice %297 {offsets = [0, 0], sizes = [1, 32], strides = [1, 1]} : vector<1x64xf32> to vector<1x32xf32>
    %299 = vector.extract_strided_slice %297 {offsets = [0, 32], sizes = [1, 32], strides = [1, 1]} : vector<1x64xf32> to vector<1x32xf32>
    %300 = vector.extract_strided_slice %287 {offsets = [0, 64], sizes = [1, 32], strides = [1, 1]} : vector<1x96xf32> to vector<1x32xf32>
    %301 = vector.extract_strided_slice %286 {offsets = [0, 64], sizes = [1, 32], strides = [1, 1]} : vector<1x96xf32> to vector<1x32xf32>
    %302 = arith.mulf %298, %301 : vector<1x32xf32>
    %303 = arith.addf %300, %302 : vector<1x32xf32>
    %304 = math.tanh %303 : vector<1x32xf32>
    %cst_73 = arith.constant 1.000000e+00 : f32
    %305 = vector.broadcast %cst_73 : f32 to vector<1x32xf32>
    %306 = arith.subf %305, %299 : vector<1x32xf32>
    %307 = arith.mulf %306, %304 : vector<1x32xf32>
    %308 = arith.mulf %299, %284 : vector<1x32xf32>
    %309 = arith.addf %307, %308 : vector<1x32xf32>
    %cst_74 = arith.constant dense<0.000000e+00> : vector<1x96xf32>
    %310 = tpu.matmul %309, %3, %cst_74 {dimension_numbers = #tpu.dot_dimension_numbers<[1], [0], [0], [1], [0, 0, 1, 1], [], []>} : vector<1x32xf32>, vector<32x96xf32>, vector<1x96xf32> -> vector<1x96xf32>
    %311 = arith.addf %310, %7 : vector<1x96xf32>
    %312 = vector.extract_strided_slice %283 {offsets = [1, 0], sizes = [1, 96], strides = [1, 1]} : vector<8x96xf32> to vector<1x96xf32>
    %313 = vector.extract_strided_slice %312 {offsets = [0, 0], sizes = [1, 64], strides = [1, 1]} : vector<1x96xf32> to vector<1x64xf32>
    %314 = vector.extract_strided_slice %311 {offsets = [0, 0], sizes = [1, 64], strides = [1, 1]} : vector<1x96xf32> to vector<1x64xf32>
    %315 = arith.addf %313, %314 : vector<1x64xf32>
    %cst_75 = arith.constant 5.000000e-01 : f32
    %316 = vector.broadcast %cst_75 : f32 to vector<1x64xf32>
    %317 = arith.mulf %316, %315 : vector<1x64xf32>
    %318 = math.tanh %317 : vector<1x64xf32>
    %cst_76 = arith.constant 5.000000e-01 : f32
    %319 = vector.broadcast %cst_76 : f32 to vector<1x64xf32>
    %320 = arith.mulf %319, %318 : vector<1x64xf32>
    %cst_77 = arith.constant 5.000000e-01 : f32
    %321 = vector.broadcast %cst_77 : f32 to vector<1x64xf32>
    %322 = arith.addf %320, %321 : vector<1x64xf32>
    %323 = vector.extract_strided_slice %322 {offsets = [0, 0], sizes = [1, 32], strides = [1, 1]} : vector<1x64xf32> to vector<1x32xf32>
    %324 = vector.extract_strided_slice %322 {offsets = [0, 32], sizes = [1, 32], strides = [1, 1]} : vector<1x64xf32> to vector<1x32xf32>
    %325 = vector.extract_strided_slice %312 {offsets = [0, 64], sizes = [1, 32], strides = [1, 1]} : vector<1x96xf32> to vector<1x32xf32>
    %326 = vector.extract_strided_slice %311 {offsets = [0, 64], sizes = [1, 32], strides = [1, 1]} : vector<1x96xf32> to vector<1x32xf32>
    %327 = arith.mulf %323, %326 : vector<1x32xf32>
    %328 = arith.addf %325, %327 : vector<1x32xf32>
    %329 = math.tanh %328 : vector<1x32xf32>
    %cst_78 = arith.constant 1.000000e+00 : f32
    %330 = vector.broadcast %cst_78 : f32 to vector<1x32xf32>
    %331 = arith.subf %330, %324 : vector<1x32xf32>
    %332 = arith.mulf %331, %329 : vector<1x32xf32>
    %333 = arith.mulf %324, %309 : vector<1x32xf32>
    %334 = arith.addf %332, %333 : vector<1x32xf32>
    %cst_79 = arith.constant dense<0.000000e+00> : vector<1x96xf32>
    %335 = tpu.matmul %334, %3, %cst_79 {dimension_numbers = #tpu.dot_dimension_numbers<[1], [0], [0], [1], [0, 0, 1, 1], [], []>} : vector<1x32xf32>, vector<32x96xf32>, vector<1x96xf32> -> vector<1x96xf32>
    %336 = arith.addf %335, %7 : vector<1x96xf32>
    %337 = vector.extract_strided_slice %283 {offsets = [2, 0], sizes = [1, 96], strides = [1, 1]} : vector<8x96xf32> to vector<1x96xf32>
    %338 = vector.extract_strided_slice %337 {offsets = [0, 0], sizes = [1, 64], strides = [1, 1]} : vector<1x96xf32> to vector<1x64xf32>
    %339 = vector.extract_strided_slice %336 {offsets = [0, 0], sizes = [1, 64], strides = [1, 1]} : vector<1x96xf32> to vector<1x64xf32>
    %340 = arith.addf %338, %339 : vector<1x64xf32>
    %cst_80 = arith.constant 5.000000e-01 : f32
    %341 = vector.broadcast %cst_80 : f32 to vector<1x64xf32>
    %342 = arith.mulf %341, %340 : vector<1x64xf32>
    %343 = math.tanh %342 : vector<1x64xf32>
    %cst_81 = arith.constant 5.000000e-01 : f32
    %344 = vector.broadcast %cst_81 : f32 to vector<1x64xf32>
    %345 = arith.mulf %344, %343 : vector<1x64xf32>
    %cst_82 = arith.constant 5.000000e-01 : f32
    %346 = vector.broadcast %cst_82 : f32 to vector<1x64xf32>
    %347 = arith.addf %345, %346 : vector<1x64xf32>
    %348 = vector.extract_strided_slice %347 {offsets = [0, 0], sizes = [1, 32], strides = [1, 1]} : vector<1x64xf32> to vector<1x32xf32>
    %349 = vector.extract_strided_slice %347 {offsets = [0, 32], sizes = [1, 32], strides = [1, 1]} : vector<1x64xf32> to vector<1x32xf32>
    %350 = vector.extract_strided_slice %337 {offsets = [0, 64], sizes = [1, 32], strides = [1, 1]} : vector<1x96xf32> to vector<1x32xf32>
    %351 = vector.extract_strided_slice %336 {offsets = [0, 64], sizes = [1, 32], strides = [1, 1]} : vector<1x96xf32> to vector<1x32xf32>
    %352 = arith.mulf %348, %351 : vector<1x32xf32>
    %353 = arith.addf %350, %352 : vector<1x32xf32>
    %354 = math.tanh %353 : vector<1x32xf32>
    %cst_83 = arith.constant 1.000000e+00 : f32
    %355 = vector.broadcast %cst_83 : f32 to vector<1x32xf32>
    %356 = arith.subf %355, %349 : vector<1x32xf32>
    %357 = arith.mulf %356, %354 : vector<1x32xf32>
    %358 = arith.mulf %349, %334 : vector<1x32xf32>
    %359 = arith.addf %357, %358 : vector<1x32xf32>
    %cst_84 = arith.constant dense<0.000000e+00> : vector<1x96xf32>
    %360 = tpu.matmul %359, %3, %cst_84 {dimension_numbers = #tpu.dot_dimension_numbers<[1], [0], [0], [1], [0, 0, 1, 1], [], []>} : vector<1x32xf32>, vector<32x96xf32>, vector<1x96xf32> -> vector<1x96xf32>
    %361 = arith.addf %360, %7 : vector<1x96xf32>
    %362 = vector.extract_strided_slice %283 {offsets = [3, 0], sizes = [1, 96], strides = [1, 1]} : vector<8x96xf32> to vector<1x96xf32>
    %363 = vector.extract_strided_slice %362 {offsets = [0, 0], sizes = [1, 64], strides = [1, 1]} : vector<1x96xf32> to vector<1x64xf32>
    %364 = vector.extract_strided_slice %361 {offsets = [0, 0], sizes = [1, 64], strides = [1, 1]} : vector<1x96xf32> to vector<1x64xf32>
    %365 = arith.addf %363, %364 : vector<1x64xf32>
    %cst_85 = arith.constant 5.000000e-01 : f32
    %366 = vector.broadcast %cst_85 : f32 to vector<1x64xf32>
    %367 = arith.mulf %366, %365 : vector<1x64xf32>
    %368 = math.tanh %367 : vector<1x64xf32>
    %cst_86 = arith.constant 5.000000e-01 : f32
    %369 = vector.broadcast %cst_86 : f32 to vector<1x64xf32>
    %370 = arith.mulf %369, %368 : vector<1x64xf32>
    %cst_87 = arith.constant 5.000000e-01 : f32
    %371 = vector.broadcast %cst_87 : f32 to vector<1x64xf32>
    %372 = arith.addf %370, %371 : vector<1x64xf32>
    %373 = vector.extract_strided_slice %372 {offsets = [0, 0], sizes = [1, 32], strides = [1, 1]} : vector<1x64xf32> to vector<1x32xf32>
    %374 = vector.extract_strided_slice %372 {offsets = [0, 32], sizes = [1, 32], strides = [1, 1]} : vector<1x64xf32> to vector<1x32xf32>
    %375 = vector.extract_strided_slice %362 {offsets = [0, 64], sizes = [1, 32], strides = [1, 1]} : vector<1x96xf32> to vector<1x32xf32>
    %376 = vector.extract_strided_slice %361 {offsets = [0, 64], sizes = [1, 32], strides = [1, 1]} : vector<1x96xf32> to vector<1x32xf32>
    %377 = arith.mulf %373, %376 : vector<1x32xf32>
    %378 = arith.addf %375, %377 : vector<1x32xf32>
    %379 = math.tanh %378 : vector<1x32xf32>
    %cst_88 = arith.constant 1.000000e+00 : f32
    %380 = vector.broadcast %cst_88 : f32 to vector<1x32xf32>
    %381 = arith.subf %380, %374 : vector<1x32xf32>
    %382 = arith.mulf %381, %379 : vector<1x32xf32>
    %383 = arith.mulf %374, %359 : vector<1x32xf32>
    %384 = arith.addf %382, %383 : vector<1x32xf32>
    %cst_89 = arith.constant dense<0.000000e+00> : vector<1x96xf32>
    %385 = tpu.matmul %384, %3, %cst_89 {dimension_numbers = #tpu.dot_dimension_numbers<[1], [0], [0], [1], [0, 0, 1, 1], [], []>} : vector<1x32xf32>, vector<32x96xf32>, vector<1x96xf32> -> vector<1x96xf32>
    %386 = arith.addf %385, %7 : vector<1x96xf32>
    %387 = vector.extract_strided_slice %283 {offsets = [4, 0], sizes = [1, 96], strides = [1, 1]} : vector<8x96xf32> to vector<1x96xf32>
    %388 = vector.extract_strided_slice %387 {offsets = [0, 0], sizes = [1, 64], strides = [1, 1]} : vector<1x96xf32> to vector<1x64xf32>
    %389 = vector.extract_strided_slice %386 {offsets = [0, 0], sizes = [1, 64], strides = [1, 1]} : vector<1x96xf32> to vector<1x64xf32>
    %390 = arith.addf %388, %389 : vector<1x64xf32>
    %cst_90 = arith.constant 5.000000e-01 : f32
    %391 = vector.broadcast %cst_90 : f32 to vector<1x64xf32>
    %392 = arith.mulf %391, %390 : vector<1x64xf32>
    %393 = math.tanh %392 : vector<1x64xf32>
    %cst_91 = arith.constant 5.000000e-01 : f32
    %394 = vector.broadcast %cst_91 : f32 to vector<1x64xf32>
    %395 = arith.mulf %394, %393 : vector<1x64xf32>
    %cst_92 = arith.constant 5.000000e-01 : f32
    %396 = vector.broadcast %cst_92 : f32 to vector<1x64xf32>
    %397 = arith.addf %395, %396 : vector<1x64xf32>
    %398 = vector.extract_strided_slice %397 {offsets = [0, 0], sizes = [1, 32], strides = [1, 1]} : vector<1x64xf32> to vector<1x32xf32>
    %399 = vector.extract_strided_slice %397 {offsets = [0, 32], sizes = [1, 32], strides = [1, 1]} : vector<1x64xf32> to vector<1x32xf32>
    %400 = vector.extract_strided_slice %387 {offsets = [0, 64], sizes = [1, 32], strides = [1, 1]} : vector<1x96xf32> to vector<1x32xf32>
    %401 = vector.extract_strided_slice %386 {offsets = [0, 64], sizes = [1, 32], strides = [1, 1]} : vector<1x96xf32> to vector<1x32xf32>
    %402 = arith.mulf %398, %401 : vector<1x32xf32>
    %403 = arith.addf %400, %402 : vector<1x32xf32>
    %404 = math.tanh %403 : vector<1x32xf32>
    %cst_93 = arith.constant 1.000000e+00 : f32
    %405 = vector.broadcast %cst_93 : f32 to vector<1x32xf32>
    %406 = arith.subf %405, %399 : vector<1x32xf32>
    %407 = arith.mulf %406, %404 : vector<1x32xf32>
    %408 = arith.mulf %399, %384 : vector<1x32xf32>
    %409 = arith.addf %407, %408 : vector<1x32xf32>
    %cst_94 = arith.constant dense<0.000000e+00> : vector<1x96xf32>
    %410 = tpu.matmul %409, %3, %cst_94 {dimension_numbers = #tpu.dot_dimension_numbers<[1], [0], [0], [1], [0, 0, 1, 1], [], []>} : vector<1x32xf32>, vector<32x96xf32>, vector<1x96xf32> -> vector<1x96xf32>
    %411 = arith.addf %410, %7 : vector<1x96xf32>
    %412 = vector.extract_strided_slice %283 {offsets = [5, 0], sizes = [1, 96], strides = [1, 1]} : vector<8x96xf32> to vector<1x96xf32>
    %413 = vector.extract_strided_slice %412 {offsets = [0, 0], sizes = [1, 64], strides = [1, 1]} : vector<1x96xf32> to vector<1x64xf32>
    %414 = vector.extract_strided_slice %411 {offsets = [0, 0], sizes = [1, 64], strides = [1, 1]} : vector<1x96xf32> to vector<1x64xf32>
    %415 = arith.addf %413, %414 : vector<1x64xf32>
    %cst_95 = arith.constant 5.000000e-01 : f32
    %416 = vector.broadcast %cst_95 : f32 to vector<1x64xf32>
    %417 = arith.mulf %416, %415 : vector<1x64xf32>
    %418 = math.tanh %417 : vector<1x64xf32>
    %cst_96 = arith.constant 5.000000e-01 : f32
    %419 = vector.broadcast %cst_96 : f32 to vector<1x64xf32>
    %420 = arith.mulf %419, %418 : vector<1x64xf32>
    %cst_97 = arith.constant 5.000000e-01 : f32
    %421 = vector.broadcast %cst_97 : f32 to vector<1x64xf32>
    %422 = arith.addf %420, %421 : vector<1x64xf32>
    %423 = vector.extract_strided_slice %422 {offsets = [0, 0], sizes = [1, 32], strides = [1, 1]} : vector<1x64xf32> to vector<1x32xf32>
    %424 = vector.extract_strided_slice %422 {offsets = [0, 32], sizes = [1, 32], strides = [1, 1]} : vector<1x64xf32> to vector<1x32xf32>
    %425 = vector.extract_strided_slice %412 {offsets = [0, 64], sizes = [1, 32], strides = [1, 1]} : vector<1x96xf32> to vector<1x32xf32>
    %426 = vector.extract_strided_slice %411 {offsets = [0, 64], sizes = [1, 32], strides = [1, 1]} : vector<1x96xf32> to vector<1x32xf32>
    %427 = arith.mulf %423, %426 : vector<1x32xf32>
    %428 = arith.addf %425, %427 : vector<1x32xf32>
    %429 = math.tanh %428 : vector<1x32xf32>
    %cst_98 = arith.constant 1.000000e+00 : f32
    %430 = vector.broadcast %cst_98 : f32 to vector<1x32xf32>
    %431 = arith.subf %430, %424 : vector<1x32xf32>
    %432 = arith.mulf %431, %429 : vector<1x32xf32>
    %433 = arith.mulf %424, %409 : vector<1x32xf32>
    %434 = arith.addf %432, %433 : vector<1x32xf32>
    %cst_99 = arith.constant dense<0.000000e+00> : vector<1x96xf32>
    %435 = tpu.matmul %434, %3, %cst_99 {dimension_numbers = #tpu.dot_dimension_numbers<[1], [0], [0], [1], [0, 0, 1, 1], [], []>} : vector<1x32xf32>, vector<32x96xf32>, vector<1x96xf32> -> vector<1x96xf32>
    %436 = arith.addf %435, %7 : vector<1x96xf32>
    %437 = vector.extract_strided_slice %283 {offsets = [6, 0], sizes = [1, 96], strides = [1, 1]} : vector<8x96xf32> to vector<1x96xf32>
    %438 = vector.extract_strided_slice %437 {offsets = [0, 0], sizes = [1, 64], strides = [1, 1]} : vector<1x96xf32> to vector<1x64xf32>
    %439 = vector.extract_strided_slice %436 {offsets = [0, 0], sizes = [1, 64], strides = [1, 1]} : vector<1x96xf32> to vector<1x64xf32>
    %440 = arith.addf %438, %439 : vector<1x64xf32>
    %cst_100 = arith.constant 5.000000e-01 : f32
    %441 = vector.broadcast %cst_100 : f32 to vector<1x64xf32>
    %442 = arith.mulf %441, %440 : vector<1x64xf32>
    %443 = math.tanh %442 : vector<1x64xf32>
    %cst_101 = arith.constant 5.000000e-01 : f32
    %444 = vector.broadcast %cst_101 : f32 to vector<1x64xf32>
    %445 = arith.mulf %444, %443 : vector<1x64xf32>
    %cst_102 = arith.constant 5.000000e-01 : f32
    %446 = vector.broadcast %cst_102 : f32 to vector<1x64xf32>
    %447 = arith.addf %445, %446 : vector<1x64xf32>
    %448 = vector.extract_strided_slice %447 {offsets = [0, 0], sizes = [1, 32], strides = [1, 1]} : vector<1x64xf32> to vector<1x32xf32>
    %449 = vector.extract_strided_slice %447 {offsets = [0, 32], sizes = [1, 32], strides = [1, 1]} : vector<1x64xf32> to vector<1x32xf32>
    %450 = vector.extract_strided_slice %437 {offsets = [0, 64], sizes = [1, 32], strides = [1, 1]} : vector<1x96xf32> to vector<1x32xf32>
    %451 = vector.extract_strided_slice %436 {offsets = [0, 64], sizes = [1, 32], strides = [1, 1]} : vector<1x96xf32> to vector<1x32xf32>
    %452 = arith.mulf %448, %451 : vector<1x32xf32>
    %453 = arith.addf %450, %452 : vector<1x32xf32>
    %454 = math.tanh %453 : vector<1x32xf32>
    %cst_103 = arith.constant 1.000000e+00 : f32
    %455 = vector.broadcast %cst_103 : f32 to vector<1x32xf32>
    %456 = arith.subf %455, %449 : vector<1x32xf32>
    %457 = arith.mulf %456, %454 : vector<1x32xf32>
    %458 = arith.mulf %449, %434 : vector<1x32xf32>
    %459 = arith.addf %457, %458 : vector<1x32xf32>
    %cst_104 = arith.constant dense<0.000000e+00> : vector<1x96xf32>
    %460 = tpu.matmul %459, %3, %cst_104 {dimension_numbers = #tpu.dot_dimension_numbers<[1], [0], [0], [1], [0, 0, 1, 1], [], []>} : vector<1x32xf32>, vector<32x96xf32>, vector<1x96xf32> -> vector<1x96xf32>
    %461 = arith.addf %460, %7 : vector<1x96xf32>
    %462 = vector.extract_strided_slice %283 {offsets = [7, 0], sizes = [1, 96], strides = [1, 1]} : vector<8x96xf32> to vector<1x96xf32>
    %463 = vector.extract_strided_slice %462 {offsets = [0, 0], sizes = [1, 64], strides = [1, 1]} : vector<1x96xf32> to vector<1x64xf32>
    %464 = vector.extract_strided_slice %461 {offsets = [0, 0], sizes = [1, 64], strides = [1, 1]} : vector<1x96xf32> to vector<1x64xf32>
    %465 = arith.addf %463, %464 : vector<1x64xf32>
    %cst_105 = arith.constant 5.000000e-01 : f32
    %466 = vector.broadcast %cst_105 : f32 to vector<1x64xf32>
    %467 = arith.mulf %466, %465 : vector<1x64xf32>
    %468 = math.tanh %467 : vector<1x64xf32>
    %cst_106 = arith.constant 5.000000e-01 : f32
    %469 = vector.broadcast %cst_106 : f32 to vector<1x64xf32>
    %470 = arith.mulf %469, %468 : vector<1x64xf32>
    %cst_107 = arith.constant 5.000000e-01 : f32
    %471 = vector.broadcast %cst_107 : f32 to vector<1x64xf32>
    %472 = arith.addf %470, %471 : vector<1x64xf32>
    %473 = vector.extract_strided_slice %472 {offsets = [0, 0], sizes = [1, 32], strides = [1, 1]} : vector<1x64xf32> to vector<1x32xf32>
    %474 = vector.extract_strided_slice %472 {offsets = [0, 32], sizes = [1, 32], strides = [1, 1]} : vector<1x64xf32> to vector<1x32xf32>
    %475 = vector.extract_strided_slice %462 {offsets = [0, 64], sizes = [1, 32], strides = [1, 1]} : vector<1x96xf32> to vector<1x32xf32>
    %476 = vector.extract_strided_slice %461 {offsets = [0, 64], sizes = [1, 32], strides = [1, 1]} : vector<1x96xf32> to vector<1x32xf32>
    %477 = arith.mulf %473, %476 : vector<1x32xf32>
    %478 = arith.addf %475, %477 : vector<1x32xf32>
    %479 = math.tanh %478 : vector<1x32xf32>
    %cst_108 = arith.constant 1.000000e+00 : f32
    %480 = vector.broadcast %cst_108 : f32 to vector<1x32xf32>
    %481 = arith.subf %480, %474 : vector<1x32xf32>
    %482 = arith.mulf %481, %479 : vector<1x32xf32>
    %483 = arith.mulf %474, %459 : vector<1x32xf32>
    %484 = arith.addf %482, %483 : vector<1x32xf32>
    %cst_109 = arith.constant dense<0.000000e+00> : vector<8x32xf32>
    %485 = tpu.matmul %278, %8, %cst_109 {dimension_numbers = #tpu.dot_dimension_numbers<[1], [0], [0], [1], [0, 0, 1, 1], [], []>} : vector<8x32xf32>, vector<32x32xf32>, vector<8x32xf32> -> vector<8x32xf32>
    %cst_110 = arith.constant dense<0.000000e+00> : vector<1x32xf32>
    %486 = tpu.matmul %484, %9, %cst_110 {dimension_numbers = #tpu.dot_dimension_numbers<[1], [0], [0], [1], [0, 0, 1, 1], [], []>} : vector<1x32xf32>, vector<32x32xf32>, vector<1x32xf32> -> vector<1x32xf32>
    %487 = vector.broadcast %486 : vector<1x32xf32> to vector<8x32xf32>
    %488 = arith.addf %485, %487 : vector<8x32xf32>
    %489 = vector.broadcast %13 : vector<1x32xf32> to vector<8x32xf32>
    %490 = arith.addf %488, %489 : vector<8x32xf32>
    %cst_111 = arith.constant 0.000000e+00 : f32
    %491 = vector.broadcast %cst_111 : f32 to vector<8x32xf32>
    %492 = arith.maximumf %490, %491 : vector<8x32xf32>
    %cst_112 = arith.constant dense<0.000000e+00> : vector<8x32xf32>
    %493 = tpu.matmul %492, %10, %cst_112 {dimension_numbers = #tpu.dot_dimension_numbers<[1], [0], [0], [1], [0, 0, 1, 1], [], []>} : vector<8x32xf32>, vector<32x32xf32>, vector<8x32xf32> -> vector<8x32xf32>
    %494 = vector.broadcast %14 : vector<1x32xf32> to vector<8x32xf32>
    %495 = arith.addf %493, %494 : vector<8x32xf32>
    %cst_113 = arith.constant 0.000000e+00 : f32
    %496 = vector.broadcast %cst_113 : f32 to vector<8x32xf32>
    %497 = arith.maximumf %495, %496 : vector<8x32xf32>
    %498 = tpu.transpose %497, [1, 0] : vector<8x32xf32> -> vector<32x8xf32>
    %cst_114 = arith.constant dense<0.000000e+00> : vector<1x8xf32>
    %499 = tpu.matmul %15, %498, %cst_114 {dimension_numbers = #tpu.dot_dimension_numbers<[1], [0], [0], [1], [0, 0, 1, 1], [], []>} : vector<1x32xf32>, vector<32x8xf32>, vector<1x8xf32> -> vector<1x8xf32>
    %500 = vector.broadcast %16 : vector<1x1xf32> to vector<1x8xf32>
    %501 = arith.addf %499, %500 : vector<1x8xf32>
    %cst_115 = arith.constant dense<0xFF800000> : vector<1xf32>
    %502 = vector.multi_reduction <maximumf>, %501, %cst_115 [1] : vector<1x8xf32> to vector<1xf32>
    %503 = vector.shape_cast %502 : vector<1xf32> to vector<1x1xf32>
    %504 = vector.broadcast %503 : vector<1x1xf32> to vector<1x8xf32>
    %505 = arith.subf %501, %504 : vector<1x8xf32>
    %506 = math.exp %505 : vector<1x8xf32>
    %cst_116 = arith.constant dense<0.000000e+00> : vector<1xf32>
    %507 = vector.multi_reduction <add>, %506, %cst_116 [1] : vector<1x8xf32> to vector<1xf32>
    %508 = vector.shape_cast %507 : vector<1xf32> to vector<1x1xf32>
    %509 = vector.broadcast %508 : vector<1x1xf32> to vector<1x8xf32>
    %510 = arith.divf %506, %509 : vector<1x8xf32>
    %c0_117 = arith.constant 0 : index
    %c0_118 = arith.constant 0 : index
    %511 = vector.load %arg3[%c0_117, %c0_118] : memref<1x8xf32, #tpu.memory_space<vmem>>, vector<1x8xf32>
    tpu.vector_store %arg3[%c0_117, %c0_118], %510 {strides = array<i32>} : memref<1x8xf32, #tpu.memory_space<vmem>>, vector<1x8xf32>,
    return
  }
  func.func @transform_0(%arg0: i32) -> (i32, i32) {
    %c0_i32 = arith.constant 0 : i32
    %c0_i32_0 = arith.constant 0 : i32
    %c0_i32_1 = arith.constant 0 : i32
    return %c0_i32, %c0_i32_0 : i32, i32
  }
  func.func @transform_1(%arg0: i32) -> (i32, i32) {
    %c0_i32 = arith.constant 0 : i32
    %c0_i32_0 = arith.constant 0 : i32
    %c0_i32_1 = arith.constant 0 : i32
    return %c0_i32, %c0_i32_0 : i32, i32
  }
  func.func @transform_2(%arg0: i32) -> (i32, i32) {
    %c0_i32 = arith.constant 0 : i32
    %c0_i32_0 = arith.constant 0 : i32
    %c0_i32_1 = arith.constant 0 : i32
    return %c0_i32, %c0_i32_0 : i32, i32
  }
}

</mosaic_0001>

<llo_original>
// kernel: tpu_custom_call.1
$region0: #{tpu_custom_call.1}
  #allocation0 [shape = 'u32[]', space=smem, size = 0x4, offset = 0x4, fixed_abs, tag = 'smem constant byte address 0x4 - core index']
  #allocation1 [shape = 'u32[144,128]{1,0:T(1,128)}', space=vmem, size = 0x12000, scoped, tag = 'internal scratch']
  %s0 = inlined_call_operand.hbm [shape: f32[8,8], index: 0, kind: input, shape index: {}]
  %s1 = inlined_call_operand.hbm [shape: f32[168,96], index: 1, kind: input, shape index: {}]
  %s2 = inlined_call_operand.hbm [shape: f32[1,8], index: 2, kind: output, shape index: {}]
  %s3 = sld [smem:[#allocation0]]
  $region26: #{tpu_custom_call.1} parent=0
    _
  %s5 = ssub.s32 1, %s3
  %s6 = scalar_select 0, %s5, %s3
  $region1: #{tpu_custom_call.1} parent=0
    #allocation2 [shape = 'u8[4096]{0}', space=vmem, size = 0x1000, scoped, tag = 'input window, operand 0, single buffered']
    #allocation3 [shape = 's32[1]{0}', space=sflag, size = 0x4, scoped, tag = 'scoped memory for tpu_custom_call.1']
    #allocation4 [shape = 's32[1]{0}', space=sflag, size = 0x4, scoped, tag = 'scoped memory for tpu_custom_call.1']
    #allocation5 [shape = 'u8[86016]{0}', space=vmem, size = 0x15000, scoped, tag = 'input window, operand 1, single buffered']
    #allocation6 [shape = 's32[1]{0}', space=sflag, size = 0x4, scoped, tag = 'scoped memory for tpu_custom_call.1']
    #allocation7 [shape = 'u8[512]{0}', space=vmem, size = 0x400, scoped, tag = 'output window, operand 0, single buffered']
    %7 = vsyncpa [#allocation3], 0
    %8 = vsyncpa [#allocation6], 0
    %9 = vsyncpa [#allocation4], 0
    // Predicated region
    $region2: #{tpu_custom_call.1} parent=1 // pred_check
      _
    $region3: #{tpu_custom_call.1} parent=1 // pred_check_branch
      %11 = sbr.rel (0) target = $region5
    $region4: #{tpu_custom_call.1} parent=1 // pred_region
      %s13 = ssub.s32 128, 128
      %14 = vsyncadd [#allocation3], %s13
      %s16 = sshll.u32 [#allocation2], 4
      %s17 = int_to_ptr.vmem [resolvable:$true] %s16
      %19 = dma.hbm_to_vmem [thread:$0]  %s0, 128, %s17, [#allocation3]
    $region5: #{tpu_custom_call.1} parent=1 // pred_fallthru
      _
    // Predicated region
    $region6: #{tpu_custom_call.1} parent=1 // pred_check
      _
    $region7: #{tpu_custom_call.1} parent=1 // pred_check_branch
      %21 = sbr.rel (0) target = $region9
    $region8: #{tpu_custom_call.1} parent=1 // pred_region
      %s23 = ssub.s32 2688, 2688
      %24 = vsyncadd [#allocation6], %s23
      %s25 = sshll.u32 [#allocation5], 4
      %s26 = int_to_ptr.vmem [resolvable:$true] %s25
      %31 = dma.hbm_to_vmem [thread:$0]  %s1, 2688, %s26, [#allocation6], 128, 128, 8
    $region9: #{tpu_custom_call.1} parent=1 // pred_fallthru
      _
    // Predicated region
    $region10: #{tpu_custom_call.1} parent=1 // pred_check
      _
    $region11: #{tpu_custom_call.1} parent=1 // pred_check_branch
      %33 = sbr.rel (0) target = $region13
    $region12: #{tpu_custom_call.1} parent=1 // pred_region
      %34 = dma.done [#allocation3], 128
    $region13: #{tpu_custom_call.1} parent=1 // pred_fallthru
      _
    // Predicated region
    $region14: #{tpu_custom_call.1} parent=1 // pred_check
      _
    $region15: #{tpu_custom_call.1} parent=1 // pred_check_branch
      %36 = sbr.rel (0) target = $region17
    $region16: #{tpu_custom_call.1} parent=1 // pred_region
      %37 = dma.done [#allocation6], 2688
    $region17: #{tpu_custom_call.1} parent=1 // pred_fallthru
      _
    %v39 = vld [vmem:[#allocation5] sm:$0xff]
    %v40 = vld [vmem:[#allocation5 + $0x8] sm:$0xff]
    %v41 = vld [vmem:[#allocation5 + $0x10] sm:$0xff]
    %v42 = vld [vmem:[#allocation5 + $0x18] sm:$0xff]
    %v43 = vld [vmem:[#allocation5 + $0x20] sm:$0xff]
    %v44 = vld [vmem:[#allocation5 + $0x28] sm:$0xff]
    %v45 = vld [vmem:[#allocation5 + $0x30] sm:$0xff]
    %v46 = vld [vmem:[#allocation5 + $0x38] sm:$0xff]
    %v47 = vld [vmem:[#allocation5 + $0x40] sm:$0xff]
    %v48 = vld [vmem:[#allocation5 + $0x48] sm:$0xff]
    %v49 = vld [vmem:[#allocation5 + $0x50] sm:$0xff]
    %v50 = vld [vmem:[#allocation5 + $0x58] sm:$0xff]
    %v51 = vld [vmem:[#allocation5 + $0x60] sm:$0xff]
    %v52 = vld [vmem:[#allocation5 + $0x68] sm:$0xff]
    %v53 = vld [vmem:[#allocation5 + $0x70] sm:$0xff]
    %v54 = vld [vmem:[#allocation5 + $0x78] sm:$0xff]
    %v55 = vld [vmem:[#allocation5 + $0x80] sm:$0x1]
    %v56 = vld [vmem:[#allocation5 + $0x81] sm:$0x1]
    %v57 = vld [vmem:[#allocation5 + $0x82] sm:$0x1]
    %v58 = vld [vmem:[#allocation5 + $0x83] sm:$0x1]
    %v59 = vld [vmem:[#allocation5 + $0x84] sm:$0xff]
    %v60 = vld [vmem:[#allocation5 + $0x8c] sm:$0xff]
    %v61 = vld [vmem:[#allocation5 + $0x94] sm:$0xff]
    %v62 = vld [vmem:[#allocation5 + $0x9c] sm:$0xff]
    %v63 = vld [vmem:[#allocation5 + $0xa4] sm:$0x1]
    %v64 = vld [vmem:[#allocation5 + $0xa5] sm:$0x1]
    %vm65 = vcmask 261120
    %v67 = vsel %vm65, %v63, 0
    %69 = vmatprep.subr.mxu0 0.0
    %70 = vmatpush1.msra.mxu0 %v39
    %71 = vmatprep.subr.mxu0 0.0
    %72 = vmatpush1.msra.mxu0 %v40
    %73 = vmatprep.subr.mxu0 0.0
    %74 = vmatpush1.msra.mxu0 %v41
    %75 = vmatprep.subr.mxu0 0.0
    %76 = vmatpush1.msra.mxu0 %v42
    %77 = vmatprep.subr.mxu0 0.0
    %78 = vmatpush1.msra.mxu0 0.0
    %79 = vmatprep.subr.mxu0 0.0
    %80 = vmatpush1.msra.mxu0 0.0
    %81 = vmatprep.subr.mxu0 0.0
    %82 = vmatpush1.msra.mxu0 0.0
    %83 = vmatprep.subr.mxu0 0.0
    %84 = vmatpush1.msra.mxu0 0.0
    %85 = vmatprep.subr.mxu0 0.0
    %86 = vmatpush1.msra.mxu0 0.0
    %87 = vmatprep.subr.mxu0 0.0
    %88 = vmatpush1.msra.mxu0 0.0
    %89 = vmatprep.subr.mxu0 0.0
    %90 = vmatpush1.msra.mxu0 0.0
    %91 = vmatprep.subr.mxu0 0.0
    %92 = vmatpush1.msra.mxu0 0.0
    %93 = vmatprep.subr.mxu0 0.0
    %94 = vmatpush1.msra.mxu0 0.0
    %95 = vmatprep.subr.mxu0 0.0
    %96 = vmatpush1.msra.mxu0 0.0
    %97 = vmatprep.subr.mxu0 0.0
    %98 = vmatpush1.msra.mxu0 0.0
    %99 = vmatprep.subr.mxu0 0.0
    %100 = vmatpush1.msra.mxu0 0.0
    %101 = vmatprep.subr.mxu0 0.0
    %102 = vmatpush1.msra.mxu0 0.0
    %103 = vmatprep.subr.mxu0 0.0
    %104 = vmatpush1.msra.mxu0 0.0
    %105 = vmatprep.subr.mxu0 0.0
    %106 = vmatpush1.msra.mxu0 0.0
    %107 = vmatprep.subr.mxu0 0.0
    %108 = vmatpush1.msra.mxu0 0.0
    %109 = vmatprep.subr.mxu0 0.0
    %110 = vmatpush1.msra.mxu0 0.0
    %111 = vmatprep.subr.mxu0 0.0
    %112 = vmatpush1.msra.mxu0 0.0
    %113 = vmatprep.subr.mxu0 0.0
    %114 = vmatpush1.msra.mxu0 0.0
    %115 = vmatprep.subr.mxu0 0.0
    %116 = vmatpush1.msra.mxu0 0.0
    %117 = vmatprep.subr.mxu0 0.0
    %118 = vmatpush1.msra.mxu0 0.0
    %119 = vmatprep.subr.mxu0 0.0
    %120 = vmatpush1.msra.mxu0 0.0
    %121 = vmatprep.subr.mxu0 0.0
    %122 = vmatpush1.msra.mxu0 0.0
    %123 = vmatprep.subr.mxu0 0.0
    %124 = vmatpush1.msra.mxu0 0.0
    %125 = vmatprep.subr.mxu0 0.0
    %126 = vmatpush1.msra.mxu0 0.0
    %127 = vmatprep.subr.mxu0 0.0
    %128 = vmatpush1.msra.mxu0 0.0
    %129 = vmatprep.subr.mxu0 0.0
    %130 = vmatpush1.msra.mxu0 0.0
    %131 = vmatprep.subr.mxu0 0.0
    %132 = vmatpush1.msra.mxu0 0.0
    %133 = vmatprep.mubr.f32.mxu0 0.0
    %134 = vmatmul.mubr.f32.gmra.mrb[0].mxu0 %v67
    %v135 = vpop.f32.mrb[0].mxu0
    %v136 = vadd.f32 0.0, %v135
    %v137 = vpop.f32.mrb[0].mxu0
    %138 = vdwg.mxu0
    %139 = vrot.lane.b32.xlu0 %v63, 96
    %v140 = vpop.permute.xlu0 %139
    %v141 = vsel %vm65, %v140, 0
    %143 = vmatprep.subr.mxu0 0.0
    %144 = vmatpush1.msra.mxu0 %v39
    %145 = vmatprep.subr.mxu0 0.0
    %146 = vmatpush1.msra.mxu0 %v40
    %147 = vmatprep.subr.mxu0 0.0
    %148 = vmatpush1.msra.mxu0 %v41
    %149 = vmatprep.subr.mxu0 0.0
    %150 = vmatpush1.msra.mxu0 %v42
    %151 = vmatprep.subr.mxu0 0.0
    %152 = vmatpush1.msra.mxu0 0.0
    %153 = vmatprep.subr.mxu0 0.0
    %154 = vmatpush1.msra.mxu0 0.0
    %155 = vmatprep.subr.mxu0 0.0
    %156 = vmatpush1.msra.mxu0 0.0
    %157 = vmatprep.subr.mxu0 0.0
    %158 = vmatpush1.msra.mxu0 0.0
    %159 = vmatprep.subr.mxu0 0.0
    %160 = vmatpush1.msra.mxu0 0.0
    %161 = vmatprep.subr.mxu0 0.0
    %162 = vmatpush1.msra.mxu0 0.0
    %163 = vmatprep.subr.mxu0 0.0
    %164 = vmatpush1.msra.mxu0 0.0
    %165 = vmatprep.subr.mxu0 0.0
    %166 = vmatpush1.msra.mxu0 0.0
    %167 = vmatprep.subr.mxu0 0.0
    %168 = vmatpush1.msra.mxu0 0.0
    %169 = vmatprep.subr.mxu0 0.0
    %170 = vmatpush1.msra.mxu0 0.0
    %171 = vmatprep.subr.mxu0 0.0
    %172 = vmatpush1.msra.mxu0 0.0
    %173 = vmatprep.subr.mxu0 0.0
    %174 = vmatpush1.msra.mxu0 0.0
    %175 = vmatprep.subr.mxu0 0.0
    %176 = vmatpush1.msra.mxu0 0.0
    %177 = vmatprep.subr.mxu0 0.0
    %178 = vmatpush1.msra.mxu0 0.0
    %179 = vmatprep.subr.mxu0 0.0
    %180 = vmatpush1.msra.mxu0 0.0
    %181 = vmatprep.subr.mxu0 0.0
    %182 = vmatpush1.msra.mxu0 0.0
    %183 = vmatprep.subr.mxu0 0.0
    %184 = vmatpush1.msra.mxu0 0.0
    %185 = vmatprep.subr.mxu0 0.0
    %186 = vmatpush1.msra.mxu0 0.0
    %187 = vmatprep.subr.mxu0 0.0
    %188 = vmatpush1.msra.mxu0 0.0
    %189 = vmatprep.subr.mxu0 0.0
    %190 = vmatpush1.msra.mxu0 0.0
    %191 = vmatprep.subr.mxu0 0.0
    %192 = vmatpush1.msra.mxu0 0.0
    %193 = vmatprep.subr.mxu0 0.0
    %194 = vmatpush1.msra.mxu0 0.0
    %195 = vmatprep.subr.mxu0 0.0
    %196 = vmatpush1.msra.mxu0 0.0
    %197 = vmatprep.subr.mxu0 0.0
    %198 = vmatpush1.msra.mxu0 0.0
    %199 = vmatprep.subr.mxu0 0.0
    %200 = vmatpush1.msra.mxu0 0.0
    %201 = vmatprep.subr.mxu0 0.0
    %202 = vmatpush1.msra.mxu0 0.0
    %203 = vmatprep.subr.mxu0 0.0
    %204 = vmatpush1.msra.mxu0 0.0
    %205 = vmatprep.subr.mxu0 0.0
    %206 = vmatpush1.msra.mxu0 0.0
    %207 = vmatprep.mubr.f32.mxu0 0.0
    %208 = vmatmul.mubr.f32.gmra.mrb[0].mxu0 %v141
    %v209 = vpop.f32.mrb[0].mxu0
    %v210 = vadd.f32 %v55, %v209
    %v211 = vpop.f32.mrb[0].mxu0
    %212 = vdwg.mxu0
    %v213 = vpack.c.bf16 %v44, %v43
    %v214 = vpack.c.bf16 %v46, %v45
    %v215 = vld [vmem:[#allocation2] sm:$0xff]
    %217 = vset.pattern.permute.xlu0 0
    %218 = vperm.xlu0 %217, %v215
    %v219 = vpop.permute.xlu0 %218
    %v221 = vlaneseq
    %v222 = vshrl.u32 %v221, 7
    %v223 = vsub.s32 0, %v222
    %v224 = vrot.slane %v136, %v223
    %v225 = vmul.f32 %v219, %v224
    %v226 = vlaneseq
    %v227 = vshrl.u32 %v226, 7
    %v228 = vsub.s32 0, %v227
    %v229 = vrot.slane %v210, %v228
    %v230 = vadd.f32 %v225, %v229
    %v231 = vlaneseq
    %v232 = vshrl.u32 %v231, 7
    %v233 = vsub.s32 0, %v232
    %v234 = vrot.slane %v56, %v233
    %v236 = vsel %vm65, 0, 0
    %238 = vmatprep.subr.bf16.mxu0 0
    %239 = vmatpush1.bf16.msra.mxu0 %v213
    %240 = vmatprep.subr.bf16.mxu0 0
    %241 = vmatpush1.bf16.msra.mxu0 %v214
    %242 = vmatprep.subr.bf16.mxu0 0
    %243 = vmatpush1.bf16.msra.mxu0 0
    %244 = vmatprep.subr.bf16.mxu0 0
    %245 = vmatpush1.bf16.msra.mxu0 0
    %246 = vmatprep.subr.bf16.mxu0 0
    %247 = vmatpush1.bf16.msra.mxu0 0
    %248 = vmatprep.subr.bf16.mxu0 0
    %249 = vmatpush1.bf16.msra.mxu0 0
    %250 = vmatprep.subr.bf16.mxu0 0
    %251 = vmatpush1.bf16.msra.mxu0 0
    %252 = vmatprep.subr.bf16.mxu0 0
    %253 = vmatpush1.bf16.msra.mxu0 0
    %254 = vmatprep.subr.bf16.mxu0 0
    %255 = vmatpush1.bf16.msra.mxu0 0
    %256 = vmatprep.subr.bf16.mxu0 0
    %257 = vmatpush1.bf16.msra.mxu0 0
    %258 = vmatprep.subr.bf16.mxu0 0
    %259 = vmatpush1.bf16.msra.mxu0 0
    %260 = vmatprep.subr.bf16.mxu0 0
    %261 = vmatpush1.bf16.msra.mxu0 0
    %262 = vmatprep.subr.bf16.mxu0 0
    %263 = vmatpush1.bf16.msra.mxu0 0
    %264 = vmatprep.subr.bf16.mxu0 0
    %265 = vmatpush1.bf16.msra.mxu0 0
    %266 = vmatprep.subr.bf16.mxu0 0
    %267 = vmatpush1.bf16.msra.mxu0 0
    %268 = vmatprep.subr.bf16.mxu0 0
    %269 = vmatpush1.bf16.msra.mxu0 0
    %270 = vmatprep.mubr.bf16.mxu0 0
    %271 = vmatmul.mubr.bf16.gmra.mrb[0].mxu0 %v236
    %v272 = vpop.f32.mrb[0].mxu0
    %v273 = vadd.f32 %v234, %v272
    %v274 = vpop.f32.mrb[0].mxu0
    %v275 = vpop.f32.mrb[0].mxu0
    %v276 = vpop.f32.mrb[0].mxu0
    %277 = vdwg.mxu0
    %v278 = vadd.f32 %v230, %v273
    %v279 = vmul.f32 %v278, 0.5
    %v280 = vtanh.pop %v279
    %v281 = vmul.f32 %v280, 0.5
    %v282 = vadd.f32 %v281, 0.5
    %284 = vrot.lane.b32.xlu0 %v273, 64
    %v285 = vpop.permute.xlu0 %284
    %v287 = vmul.f32 %v282, %v285
    %289 = vrot.lane.b32.xlu0 %v287, 64
    %v290 = vpop.permute.xlu0 %289
    %v292 = vadd.f32 %v230, %v290
    %v293 = vtanh.pop %v292
    %v294 = vsub.f32 1.0, %v282
    %296 = vrot.lane.b32.xlu0 %v293, 96
    %v297 = vpop.permute.xlu0 %296
    %v299 = vmul.f32 %v294, %v297
    %v300 = vmul.f32 %v282, 0.0
    %v301 = vadd.f32 %v299, %v300
    %302 = vset.pattern.permute.xlu0 1
    %303 = vperm.xlu0 %302, %v215
    %v304 = vpop.permute.xlu0 %303
    %v306 = vmul.f32 %v304, %v224
    %v307 = vadd.f32 %v306, %v229
    %v308 = vpack.c.bf16 %v301, %v301
    %310 = vrot.lane.b32.xlu0 %v308, 96
    %v311 = vpop.permute.xlu0 %310
    %v313 = vsel %vm65, %v311, 0
    %315 = vmatprep.subr.bf16.mxu0 0
    %316 = vmatpush1.bf16.msra.mxu0 %v213
    %317 = vmatprep.subr.bf16.mxu0 0
    %318 = vmatpush1.bf16.msra.mxu0 %v214
    %319 = vmatprep.subr.bf16.mxu0 0
    %320 = vmatpush1.bf16.msra.mxu0 0
    %321 = vmatprep.subr.bf16.mxu0 0
    %322 = vmatpush1.bf16.msra.mxu0 0
    %323 = vmatprep.subr.bf16.mxu0 0
    %324 = vmatpush1.bf16.msra.mxu0 0
    %325 = vmatprep.subr.bf16.mxu0 0
    %326 = vmatpush1.bf16.msra.mxu0 0
    %327 = vmatprep.subr.bf16.mxu0 0
    %328 = vmatpush1.bf16.msra.mxu0 0
    %329 = vmatprep.subr.bf16.mxu0 0
    %330 = vmatpush1.bf16.msra.mxu0 0
    %331 = vmatprep.subr.bf16.mxu0 0
    %332 = vmatpush1.bf16.msra.mxu0 0
    %333 = vmatprep.subr.bf16.mxu0 0
    %334 = vmatpush1.bf16.msra.mxu0 0
    %335 = vmatprep.subr.bf16.mxu0 0
    %336 = vmatpush1.bf16.msra.mxu0 0
    %337 = vmatprep.subr.bf16.mxu0 0
    %338 = vmatpush1.bf16.msra.mxu0 0
    %339 = vmatprep.subr.bf16.mxu0 0
    %340 = vmatpush1.bf16.msra.mxu0 0
    %341 = vmatprep.subr.bf16.mxu0 0
    %342 = vmatpush1.bf16.msra.mxu0 0
    %343 = vmatprep.subr.bf16.mxu0 0
    %344 = vmatpush1.bf16.msra.mxu0 0
    %345 = vmatprep.subr.bf16.mxu0 0
    %346 = vmatpush1.bf16.msra.mxu0 0
    %347 = vmatprep.mubr.bf16.mxu0 0
    %348 = vmatmul.mubr.bf16.gmra.mrb[0].mxu0 %v313
    %v349 = vpop.f32.mrb[0].mxu0
    %v350 = vadd.f32 %v234, %v349
    %v351 = vpop.f32.mrb[0].mxu0
    %v352 = vpop.f32.mrb[0].mxu0
    %v353 = vpop.f32.mrb[0].mxu0
    %354 = vdwg.mxu0
    %v355 = vadd.f32 %v307, %v350
    %v356 = vmul.f32 %v355, 0.5
    %v357 = vtanh.pop %v356
    %v358 = vmul.f32 %v357, 0.5
    %v359 = vadd.f32 %v358, 0.5
    %361 = vrot.lane.b32.xlu0 %v350, 64
    %v362 = vpop.permute.xlu0 %361
    %v364 = vmul.f32 %v359, %v362
    %366 = vrot.lane.b32.xlu0 %v364, 64
    %v367 = vpop.permute.xlu0 %366
    %v369 = vadd.f32 %v307, %v367
    %v370 = vtanh.pop %v369
    %v371 = vsub.f32 1.0, %v359
    %373 = vrot.lane.b32.xlu0 %v370, 96
    %v374 = vpop.permute.xlu0 %373
    %v376 = vmul.f32 %v371, %v374
    %v377 = vmul.f32 %v359, %v301
    %v378 = vadd.f32 %v376, %v377
    %379 = vset.pattern.permute.xlu0 2
    %380 = vperm.xlu0 %379, %v215
    %v381 = vpop.permute.xlu0 %380
    %v383 = vmul.f32 %v381, %v224
    %v384 = vadd.f32 %v383, %v229
    %v385 = vpack.c.bf16 %v378, %v378
    %387 = vrot.lane.b32.xlu0 %v385, 96
    %v388 = vpop.permute.xlu0 %387
    %v390 = vsel %vm65, %v388, 0
    %392 = vmatprep.subr.bf16.mxu0 0
    %393 = vmatpush1.bf16.msra.mxu0 %v213
    %394 = vmatprep.subr.bf16.mxu0 0
    %395 = vmatpush1.bf16.msra.mxu0 %v214
    %396 = vmatprep.subr.bf16.mxu0 0
    %397 = vmatpush1.bf16.msra.mxu0 0
    %398 = vmatprep.subr.bf16.mxu0 0
    %399 = vmatpush1.bf16.msra.mxu0 0
    %400 = vmatprep.subr.bf16.mxu0 0
    %401 = vmatpush1.bf16.msra.mxu0 0
    %402 = vmatprep.subr.bf16.mxu0 0
    %403 = vmatpush1.bf16.msra.mxu0 0
    %404 = vmatprep.subr.bf16.mxu0 0
    %405 = vmatpush1.bf16.msra.mxu0 0
    %406 = vmatprep.subr.bf16.mxu0 0
    %407 = vmatpush1.bf16.msra.mxu0 0
    %408 = vmatprep.subr.bf16.mxu0 0
    %409 = vmatpush1.bf16.msra.mxu0 0
    %410 = vmatprep.subr.bf16.mxu0 0
    %411 = vmatpush1.bf16.msra.mxu0 0
    %412 = vmatprep.subr.bf16.mxu0 0
    %413 = vmatpush1.bf16.msra.mxu0 0
    %414 = vmatprep.subr.bf16.mxu0 0
    %415 = vmatpush1.bf16.msra.mxu0 0
    %416 = vmatprep.subr.bf16.mxu0 0
    %417 = vmatpush1.bf16.msra.mxu0 0
    %418 = vmatprep.subr.bf16.mxu0 0
    %419 = vmatpush1.bf16.msra.mxu0 0
    %420 = vmatprep.subr.bf16.mxu0 0
    %421 = vmatpush1.bf16.msra.mxu0 0
    %422 = vmatprep.subr.bf16.mxu0 0
    %423 = vmatpush1.bf16.msra.mxu0 0
    %424 = vmatprep.mubr.bf16.mxu0 0
    %425 = vmatmul.mubr.bf16.gmra.mrb[0].mxu0 %v390
    %v426 = vpop.f32.mrb[0].mxu0
    %v427 = vadd.f32 %v234, %v426
    %v428 = vpop.f32.mrb[0].mxu0
    %v429 = vpop.f32.mrb[0].mxu0
    %v430 = vpop.f32.mrb[0].mxu0
    %431 = vdwg.mxu0
    %v432 = vadd.f32 %v384, %v427
    %v433 = vmul.f32 %v432, 0.5
    %v434 = vtanh.pop %v433
    %v435 = vmul.f32 %v434, 0.5
    %v436 = vadd.f32 %v435, 0.5
    %438 = vrot.lane.b32.xlu0 %v427, 64
    %v439 = vpop.permute.xlu0 %438
    %v441 = vmul.f32 %v436, %v439
    %443 = vrot.lane.b32.xlu0 %v441, 64
    %v444 = vpop.permute.xlu0 %443
    %v446 = vadd.f32 %v384, %v444
    %v447 = vtanh.pop %v446
    %v448 = vsub.f32 1.0, %v436
    %450 = vrot.lane.b32.xlu0 %v447, 96
    %v451 = vpop.permute.xlu0 %450
    %v453 = vmul.f32 %v448, %v451
    %v454 = vmul.f32 %v436, %v378
    %v455 = vadd.f32 %v453, %v454
    %456 = vset.pattern.permute.xlu0 3
    %457 = vperm.xlu0 %456, %v215
    %v458 = vpop.permute.xlu0 %457
    %v460 = vmul.f32 %v458, %v224
    %v461 = vadd.f32 %v460, %v229
    %v462 = vpack.c.bf16 %v455, %v455
    %464 = vrot.lane.b32.xlu0 %v462, 96
    %v465 = vpop.permute.xlu0 %464
    %v467 = vsel %vm65, %v465, 0
    %469 = vmatprep.subr.bf16.mxu0 0
    %470 = vmatpush1.bf16.msra.mxu0 %v213
    %471 = vmatprep.subr.bf16.mxu0 0
    %472 = vmatpush1.bf16.msra.mxu0 %v214
    %473 = vmatprep.subr.bf16.mxu0 0
    %474 = vmatpush1.bf16.msra.mxu0 0
    %475 = vmatprep.subr.bf16.mxu0 0
    %476 = vmatpush1.bf16.msra.mxu0 0
    %477 = vmatprep.subr.bf16.mxu0 0
    %478 = vmatpush1.bf16.msra.mxu0 0
    %479 = vmatprep.subr.bf16.mxu0 0
    %480 = vmatpush1.bf16.msra.mxu0 0
    %481 = vmatprep.subr.bf16.mxu0 0
    %482 = vmatpush1.bf16.msra.mxu0 0
    %483 = vmatprep.subr.bf16.mxu0 0
    %484 = vmatpush1.bf16.msra.mxu0 0
    %485 = vmatprep.subr.bf16.mxu0 0
    %486 = vmatpush1.bf16.msra.mxu0 0
    %487 = vmatprep.subr.bf16.mxu0 0
    %488 = vmatpush1.bf16.msra.mxu0 0
    %489 = vmatprep.subr.bf16.mxu0 0
    %490 = vmatpush1.bf16.msra.mxu0 0
    %491 = vmatprep.subr.bf16.mxu0 0
    %492 = vmatpush1.bf16.msra.mxu0 0
    %493 = vmatprep.subr.bf16.mxu0 0
    %494 = vmatpush1.bf16.msra.mxu0 0
    %495 = vmatprep.subr.bf16.mxu0 0
    %496 = vmatpush1.bf16.msra.mxu0 0
    %497 = vmatprep.subr.bf16.mxu0 0
    %498 = vmatpush1.bf16.msra.mxu0 0
    %499 = vmatprep.subr.bf16.mxu0 0
    %500 = vmatpush1.bf16.msra.mxu0 0
    %501 = vmatprep.mubr.bf16.mxu0 0
    %502 = vmatmul.mubr.bf16.gmra.mrb[0].mxu0 %v467
    %v503 = vpop.f32.mrb[0].mxu0
    %v504 = vadd.f32 %v234, %v503
    %v505 = vpop.f32.mrb[0].mxu0
    %v506 = vpop.f32.mrb[0].mxu0
    %v507 = vpop.f32.mrb[0].mxu0
    %508 = vdwg.mxu0
    %v509 = vadd.f32 %v461, %v504
    %v510 = vmul.f32 %v509, 0.5
    %v511 = vtanh.pop %v510
    %v512 = vmul.f32 %v511, 0.5
    %v513 = vadd.f32 %v512, 0.5
    %515 = vrot.lane.b32.xlu0 %v504, 64
    %v516 = vpop.permute.xlu0 %515
    %v518 = vmul.f32 %v513, %v516
    %520 = vrot.lane.b32.xlu0 %v518, 64
    %v521 = vpop.permute.xlu0 %520
    %v523 = vadd.f32 %v461, %v521
    %v524 = vtanh.pop %v523
    %v525 = vsub.f32 1.0, %v513
    %527 = vrot.lane.b32.xlu0 %v524, 96
    %v528 = vpop.permute.xlu0 %527
    %v530 = vmul.f32 %v525, %v528
    %v531 = vmul.f32 %v513, %v455
    %v532 = vadd.f32 %v530, %v531
    %533 = vset.pattern.permute.xlu0 4
    %534 = vperm.xlu0 %533, %v215
    %v535 = vpop.permute.xlu0 %534
    %v537 = vmul.f32 %v535, %v224
    %v538 = vadd.f32 %v537, %v229
    %v539 = vpack.c.bf16 %v532, %v532
    %541 = vrot.lane.b32.xlu0 %v539, 96
    %v542 = vpop.permute.xlu0 %541
    %v544 = vsel %vm65, %v542, 0
    %546 = vmatprep.subr.bf16.mxu0 0
    %547 = vmatpush1.bf16.msra.mxu0 %v213
    %548 = vmatprep.subr.bf16.mxu0 0
    %549 = vmatpush1.bf16.msra.mxu0 %v214
    %550 = vmatprep.subr.bf16.mxu0 0
    %551 = vmatpush1.bf16.msra.mxu0 0
    %552 = vmatprep.subr.bf16.mxu0 0
    %553 = vmatpush1.bf16.msra.mxu0 0
    %554 = vmatprep.subr.bf16.mxu0 0
    %555 = vmatpush1.bf16.msra.mxu0 0
    %556 = vmatprep.subr.bf16.mxu0 0
    %557 = vmatpush1.bf16.msra.mxu0 0
    %558 = vmatprep.subr.bf16.mxu0 0
    %559 = vmatpush1.bf16.msra.mxu0 0
    %560 = vmatprep.subr.bf16.mxu0 0
    %561 = vmatpush1.bf16.msra.mxu0 0
    %562 = vmatprep.subr.bf16.mxu0 0
    %563 = vmatpush1.bf16.msra.mxu0 0
    %564 = vmatprep.subr.bf16.mxu0 0
    %565 = vmatpush1.bf16.msra.mxu0 0
    %566 = vmatprep.subr.bf16.mxu0 0
    %567 = vmatpush1.bf16.msra.mxu0 0
    %568 = vmatprep.subr.bf16.mxu0 0
    %569 = vmatpush1.bf16.msra.mxu0 0
    %570 = vmatprep.subr.bf16.mxu0 0
    %571 = vmatpush1.bf16.msra.mxu0 0
    %572 = vmatprep.subr.bf16.mxu0 0
    %573 = vmatpush1.bf16.msra.mxu0 0
    %574 = vmatprep.subr.bf16.mxu0 0
    %575 = vmatpush1.bf16.msra.mxu0 0
    %576 = vmatprep.subr.bf16.mxu0 0
    %577 = vmatpush1.bf16.msra.mxu0 0
    %578 = vmatprep.mubr.bf16.mxu0 0
    %579 = vmatmul.mubr.bf16.gmra.mrb[0].mxu0 %v544
    %v580 = vpop.f32.mrb[0].mxu0
    %v581 = vadd.f32 %v234, %v580
    %v582 = vpop.f32.mrb[0].mxu0
    %v583 = vpop.f32.mrb[0].mxu0
    %v584 = vpop.f32.mrb[0].mxu0
    %585 = vdwg.mxu0
    %v586 = vadd.f32 %v538, %v581
    %v587 = vmul.f32 %v586, 0.5
    %v588 = vtanh.pop %v587
    %v589 = vmul.f32 %v588, 0.5
    %v590 = vadd.f32 %v589, 0.5
    %592 = vrot.lane.b32.xlu0 %v581, 64
    %v593 = vpop.permute.xlu0 %592
    %v595 = vmul.f32 %v590, %v593
    %597 = vrot.lane.b32.xlu0 %v595, 64
    %v598 = vpop.permute.xlu0 %597
    %v600 = vadd.f32 %v538, %v598
    %v601 = vtanh.pop %v600
    %v602 = vsub.f32 1.0, %v590
    %604 = vrot.lane.b32.xlu0 %v601, 96
    %v605 = vpop.permute.xlu0 %604
    %v607 = vmul.f32 %v602, %v605
    %v608 = vmul.f32 %v590, %v532
    %v609 = vadd.f32 %v607, %v608
    %610 = vset.pattern.permute.xlu0 5
    %611 = vperm.xlu0 %610, %v215
    %v612 = vpop.permute.xlu0 %611
    %v614 = vmul.f32 %v612, %v224
    %v615 = vadd.f32 %v614, %v229
    %v616 = vpack.c.bf16 %v609, %v609
    %618 = vrot.lane.b32.xlu0 %v616, 96
    %v619 = vpop.permute.xlu0 %618
    %v621 = vsel %vm65, %v619, 0
    %623 = vmatprep.subr.bf16.mxu0 0
    %624 = vmatpush1.bf16.msra.mxu0 %v213
    %625 = vmatprep.subr.bf16.mxu0 0
    %626 = vmatpush1.bf16.msra.mxu0 %v214
    %627 = vmatprep.subr.bf16.mxu0 0
    %628 = vmatpush1.bf16.msra.mxu0 0
    %629 = vmatprep.subr.bf16.mxu0 0
    %630 = vmatpush1.bf16.msra.mxu0 0
    %631 = vmatprep.subr.bf16.mxu0 0
    %632 = vmatpush1.bf16.msra.mxu0 0
    %633 = vmatprep.subr.bf16.mxu0 0
    %634 = vmatpush1.bf16.msra.mxu0 0
    %635 = vmatprep.subr.bf16.mxu0 0
    %636 = vmatpush1.bf16.msra.mxu0 0
    %637 = vmatprep.subr.bf16.mxu0 0
    %638 = vmatpush1.bf16.msra.mxu0 0
    %639 = vmatprep.subr.bf16.mxu0 0
    %640 = vmatpush1.bf16.msra.mxu0 0
    %641 = vmatprep.subr.bf16.mxu0 0
    %642 = vmatpush1.bf16.msra.mxu0 0
    %643 = vmatprep.subr.bf16.mxu0 0
    %644 = vmatpush1.bf16.msra.mxu0 0
    %645 = vmatprep.subr.bf16.mxu0 0
    %646 = vmatpush1.bf16.msra.mxu0 0
    %647 = vmatprep.subr.bf16.mxu0 0
    %648 = vmatpush1.bf16.msra.mxu0 0
    %649 = vmatprep.subr.bf16.mxu0 0
    %650 = vmatpush1.bf16.msra.mxu0 0
    %651 = vmatprep.subr.bf16.mxu0 0
    %652 = vmatpush1.bf16.msra.mxu0 0
    %653 = vmatprep.subr.bf16.mxu0 0
    %654 = vmatpush1.bf16.msra.mxu0 0
    %655 = vmatprep.mubr.bf16.mxu0 0
    %656 = vmatmul.mubr.bf16.gmra.mrb[0].mxu0 %v621
    %v657 = vpop.f32.mrb[0].mxu0
    %v658 = vadd.f32 %v234, %v657
    %v659 = vpop.f32.mrb[0].mxu0
    %v660 = vpop.f32.mrb[0].mxu0
    %v661 = vpop.f32.mrb[0].mxu0
    %662 = vdwg.mxu0
    %v663 = vadd.f32 %v615, %v658
    %v664 = vmul.f32 %v663, 0.5
    %v665 = vtanh.pop %v664
    %v666 = vmul.f32 %v665, 0.5
    %v667 = vadd.f32 %v666, 0.5
    %669 = vrot.lane.b32.xlu0 %v658, 64
    %v670 = vpop.permute.xlu0 %669
    %v672 = vmul.f32 %v667, %v670
    %674 = vrot.lane.b32.xlu0 %v672, 64
    %v675 = vpop.permute.xlu0 %674
    %v677 = vadd.f32 %v615, %v675
    %v678 = vtanh.pop %v677
    %v679 = vsub.f32 1.0, %v667
    %681 = vrot.lane.b32.xlu0 %v678, 96
    %v682 = vpop.permute.xlu0 %681
    %v684 = vmul.f32 %v679, %v682
    %v685 = vmul.f32 %v667, %v609
    %v686 = vadd.f32 %v684, %v685
    %687 = vset.pattern.permute.xlu0 6
    %688 = vperm.xlu0 %687, %v215
    %v689 = vpop.permute.xlu0 %688
    %v691 = vmul.f32 %v689, %v224
    %v692 = vadd.f32 %v691, %v229
    %v693 = vpack.c.bf16 %v686, %v686
    %695 = vrot.lane.b32.xlu0 %v693, 96
    %v696 = vpop.permute.xlu0 %695
    %v698 = vsel %vm65, %v696, 0
    %700 = vmatprep.subr.bf16.mxu0 0
    %701 = vmatpush1.bf16.msra.mxu0 %v213
    %702 = vmatprep.subr.bf16.mxu0 0
    %703 = vmatpush1.bf16.msra.mxu0 %v214
    %704 = vmatprep.subr.bf16.mxu0 0
    %705 = vmatpush1.bf16.msra.mxu0 0
    %706 = vmatprep.subr.bf16.mxu0 0
    %707 = vmatpush1.bf16.msra.mxu0 0
    %708 = vmatprep.subr.bf16.mxu0 0
    %709 = vmatpush1.bf16.msra.mxu0 0
    %710 = vmatprep.subr.bf16.mxu0 0
    %711 = vmatpush1.bf16.msra.mxu0 0
    %712 = vmatprep.subr.bf16.mxu0 0
    %713 = vmatpush1.bf16.msra.mxu0 0
    %714 = vmatprep.subr.bf16.mxu0 0
    %715 = vmatpush1.bf16.msra.mxu0 0
    %716 = vmatprep.subr.bf16.mxu0 0
    %717 = vmatpush1.bf16.msra.mxu0 0
    %718 = vmatprep.subr.bf16.mxu0 0
    %719 = vmatpush1.bf16.msra.mxu0 0
    %720 = vmatprep.subr.bf16.mxu0 0
    %721 = vmatpush1.bf16.msra.mxu0 0
    %722 = vmatprep.subr.bf16.mxu0 0
    %723 = vmatpush1.bf16.msra.mxu0 0
    %724 = vmatprep.subr.bf16.mxu0 0
    %725 = vmatpush1.bf16.msra.mxu0 0
    %726 = vmatprep.subr.bf16.mxu0 0
    %727 = vmatpush1.bf16.msra.mxu0 0
    %728 = vmatprep.subr.bf16.mxu0 0
    %729 = vmatpush1.bf16.msra.mxu0 0
    %730 = vmatprep.subr.bf16.mxu0 0
    %731 = vmatpush1.bf16.msra.mxu0 0
    %732 = vmatprep.mubr.bf16.mxu0 0
    %733 = vmatmul.mubr.bf16.gmra.mrb[0].mxu0 %v698
    %v734 = vpop.f32.mrb[0].mxu0
    %v735 = vadd.f32 %v234, %v734
    %v736 = vpop.f32.mrb[0].mxu0
    %v737 = vpop.f32.mrb[0].mxu0
    %v738 = vpop.f32.mrb[0].mxu0
    %739 = vdwg.mxu0
    %v740 = vadd.f32 %v692, %v735
    %v741 = vmul.f32 %v740, 0.5
    %v742 = vtanh.pop %v741
    %v743 = vmul.f32 %v742, 0.5
    %v744 = vadd.f32 %v743, 0.5
    %746 = vrot.lane.b32.xlu0 %v735, 64
    %v747 = vpop.permute.xlu0 %746
    %v749 = vmul.f32 %v744, %v747
    %751 = vrot.lane.b32.xlu0 %v749, 64
    %v752 = vpop.permute.xlu0 %751
    %v754 = vadd.f32 %v692, %v752
    %v755 = vtanh.pop %v754
    %v756 = vsub.f32 1.0, %v744
    %758 = vrot.lane.b32.xlu0 %v755, 96
    %v759 = vpop.permute.xlu0 %758
    %v761 = vmul.f32 %v756, %v759
    %v762 = vmul.f32 %v744, %v686
    %v763 = vadd.f32 %v761, %v762
    %764 = vset.pattern.permute.xlu0 7
    %765 = vperm.xlu0 %764, %v215
    %v766 = vpop.permute.xlu0 %765
    %v768 = vmul.f32 %v766, %v224
    %v769 = vadd.f32 %v768, %v229
    %v770 = vpack.c.bf16 %v763, %v763
    %772 = vrot.lane.b32.xlu0 %v770, 96
    %v773 = vpop.permute.xlu0 %772
    %v775 = vsel %vm65, %v773, 0
    %777 = vmatprep.subr.bf16.mxu0 0
    %778 = vmatpush1.bf16.msra.mxu0 %v213
    %779 = vmatprep.subr.bf16.mxu0 0
    %780 = vmatpush1.bf16.msra.mxu0 %v214
    %781 = vmatprep.subr.bf16.mxu0 0
    %782 = vmatpush1.bf16.msra.mxu0 0
    %783 = vmatprep.subr.bf16.mxu0 0
    %784 = vmatpush1.bf16.msra.mxu0 0
    %785 = vmatprep.subr.bf16.mxu0 0
    %786 = vmatpush1.bf16.msra.mxu0 0
    %787 = vmatprep.subr.bf16.mxu0 0
    %788 = vmatpush1.bf16.msra.mxu0 0
    %789 = vmatprep.subr.bf16.mxu0 0
    %790 = vmatpush1.bf16.msra.mxu0 0
    %791 = vmatprep.subr.bf16.mxu0 0
    %792 = vmatpush1.bf16.msra.mxu0 0
    %793 = vmatprep.subr.bf16.mxu0 0
    %794 = vmatpush1.bf16.msra.mxu0 0
    %795 = vmatprep.subr.bf16.mxu0 0
    %796 = vmatpush1.bf16.msra.mxu0 0
    %797 = vmatprep.subr.bf16.mxu0 0
    %798 = vmatpush1.bf16.msra.mxu0 0
    %799 = vmatprep.subr.bf16.mxu0 0
    %800 = vmatpush1.bf16.msra.mxu0 0
    %801 = vmatprep.subr.bf16.mxu0 0
    %802 = vmatpush1.bf16.msra.mxu0 0
    %803 = vmatprep.subr.bf16.mxu0 0
    %804 = vmatpush1.bf16.msra.mxu0 0
    %805 = vmatprep.subr.bf16.mxu0 0
    %806 = vmatpush1.bf16.msra.mxu0 0
    %807 = vmatprep.subr.bf16.mxu0 0
    %808 = vmatpush1.bf16.msra.mxu0 0
    %809 = vmatprep.mubr.bf16.mxu0 0
    %810 = vmatmul.mubr.bf16.gmra.mrb[0].mxu0 %v775
    %v811 = vpop.f32.mrb[0].mxu0
    %v812 = vadd.f32 %v234, %v811
    %v813 = vpop.f32.mrb[0].mxu0
    %v814 = vpop.f32.mrb[0].mxu0
    %v815 = vpop.f32.mrb[0].mxu0
    %816 = vdwg.mxu0
    %v817 = vadd.f32 %v769, %v812
    %v818 = vmul.f32 %v817, 0.5
    %v819 = vtanh.pop %v818
    %v820 = vmul.f32 %v819, 0.5
    %v821 = vadd.f32 %v820, 0.5
    %823 = vrot.lane.b32.xlu0 %v812, 64
    %v824 = vpop.permute.xlu0 %823
    %v826 = vmul.f32 %v821, %v824
    %828 = vrot.lane.b32.xlu0 %v826, 64
    %v829 = vpop.permute.xlu0 %828
    %v831 = vadd.f32 %v769, %v829
    %v832 = vtanh.pop %v831
    %v833 = vsub.f32 1.0, %v821
    %835 = vrot.lane.b32.xlu0 %v832, 96
    %v836 = vpop.permute.xlu0 %835
    %v838 = vmul.f32 %v833, %v836
    %v839 = vmul.f32 %v821, %v763
    %v840 = vadd.f32 %v838, %v839
    %v841 = vpack.c.bf16 %v840, %v840
    %v842 = vpack.c.bf16 %v48, %v47
    %v843 = vpack.c.bf16 %v50, %v49
    %v844 = vlaneseq
    %v845 = vshrl.u32 %v844, 7
    %v846 = vsub.s32 0, %v845
    %v847 = vrot.slane %v57, %v846
    %849 = vrot.lane.b32.xlu0 %v841, 96
    %v850 = vpop.permute.xlu0 %849
    %v852 = vsel %vm65, %v850, 0
    %854 = vmatprep.subr.bf16.mxu0 0
    %855 = vmatpush1.bf16.msra.mxu0 %v842
    %856 = vmatprep.subr.bf16.mxu0 0
    %857 = vmatpush1.bf16.msra.mxu0 %v843
    %858 = vmatprep.subr.bf16.mxu0 0
    %859 = vmatpush1.bf16.msra.mxu0 0
    %860 = vmatprep.subr.bf16.mxu0 0
    %861 = vmatpush1.bf16.msra.mxu0 0
    %862 = vmatprep.subr.bf16.mxu0 0
    %863 = vmatpush1.bf16.msra.mxu0 0
    %864 = vmatprep.subr.bf16.mxu0 0
    %865 = vmatpush1.bf16.msra.mxu0 0
    %866 = vmatprep.subr.bf16.mxu0 0
    %867 = vmatpush1.bf16.msra.mxu0 0
    %868 = vmatprep.subr.bf16.mxu0 0
    %869 = vmatpush1.bf16.msra.mxu0 0
    %870 = vmatprep.subr.bf16.mxu0 0
    %871 = vmatpush1.bf16.msra.mxu0 0
    %872 = vmatprep.subr.bf16.mxu0 0
    %873 = vmatpush1.bf16.msra.mxu0 0
    %874 = vmatprep.subr.bf16.mxu0 0
    %875 = vmatpush1.bf16.msra.mxu0 0
    %876 = vmatprep.subr.bf16.mxu0 0
    %877 = vmatpush1.bf16.msra.mxu0 0
    %878 = vmatprep.subr.bf16.mxu0 0
    %879 = vmatpush1.bf16.msra.mxu0 0
    %880 = vmatprep.subr.bf16.mxu0 0
    %881 = vmatpush1.bf16.msra.mxu0 0
    %882 = vmatprep.subr.bf16.mxu0 0
    %883 = vmatpush1.bf16.msra.mxu0 0
    %884 = vmatprep.subr.bf16.mxu0 0
    %885 = vmatpush1.bf16.msra.mxu0 0
    %886 = vmatprep.mubr.bf16.mxu0 0
    %887 = vmatmul.mubr.bf16.gmra.mrb[0].mxu0 %v852
    %v888 = vpop.f32.mrb[0].mxu0
    %v889 = vadd.f32 %v847, %v888
    %v890 = vpop.f32.mrb[0].mxu0
    %v891 = vpop.f32.mrb[0].mxu0
    %v892 = vpop.f32.mrb[0].mxu0
    %893 = vdwg.mxu0
    %v895 = vsel %vm65, 0.0, 0
    %897 = vmatprep.subr.mxu0 0.0
    %898 = vmatpush1.msra.mxu0 %v51
    %899 = vmatprep.subr.mxu0 0.0
    %900 = vmatpush1.msra.mxu0 %v52
    %901 = vmatprep.subr.mxu0 0.0
    %902 = vmatpush1.msra.mxu0 %v53
    %903 = vmatprep.subr.mxu0 0.0
    %904 = vmatpush1.msra.mxu0 %v54
    %905 = vmatprep.subr.mxu0 0.0
    %906 = vmatpush1.msra.mxu0 0.0
    %907 = vmatprep.subr.mxu0 0.0
    %908 = vmatpush1.msra.mxu0 0.0
    %909 = vmatprep.subr.mxu0 0.0
    %910 = vmatpush1.msra.mxu0 0.0
    %911 = vmatprep.subr.mxu0 0.0
    %912 = vmatpush1.msra.mxu0 0.0
    %913 = vmatprep.subr.mxu0 0.0
    %914 = vmatpush1.msra.mxu0 0.0
    %915 = vmatprep.subr.mxu0 0.0
    %916 = vmatpush1.msra.mxu0 0.0
    %917 = vmatprep.subr.mxu0 0.0
    %918 = vmatpush1.msra.mxu0 0.0
    %919 = vmatprep.subr.mxu0 0.0
    %920 = vmatpush1.msra.mxu0 0.0
    %921 = vmatprep.subr.mxu0 0.0
    %922 = vmatpush1.msra.mxu0 0.0
    %923 = vmatprep.subr.mxu0 0.0
    %924 = vmatpush1.msra.mxu0 0.0
    %925 = vmatprep.subr.mxu0 0.0
    %926 = vmatpush1.msra.mxu0 0.0
    %927 = vmatprep.subr.mxu0 0.0
    %928 = vmatpush1.msra.mxu0 0.0
    %929 = vmatprep.subr.mxu0 0.0
    %930 = vmatpush1.msra.mxu0 0.0
    %931 = vmatprep.subr.mxu0 0.0
    %932 = vmatpush1.msra.mxu0 0.0
    %933 = vmatprep.subr.mxu0 0.0
    %934 = vmatpush1.msra.mxu0 0.0
    %935 = vmatprep.subr.mxu0 0.0
    %936 = vmatpush1.msra.mxu0 0.0
    %937 = vmatprep.subr.mxu0 0.0
    %938 = vmatpush1.msra.mxu0 0.0
    %939 = vmatprep.subr.mxu0 0.0
    %940 = vmatpush1.msra.mxu0 0.0
    %941 = vmatprep.subr.mxu0 0.0
    %942 = vmatpush1.msra.mxu0 0.0
    %943 = vmatprep.subr.mxu0 0.0
    %944 = vmatpush1.msra.mxu0 0.0
    %945 = vmatprep.subr.mxu0 0.0
    %946 = vmatpush1.msra.mxu0 0.0
    %947 = vmatprep.subr.mxu0 0.0
    %948 = vmatpush1.msra.mxu0 0.0
    %949 = vmatprep.subr.mxu0 0.0
    %950 = vmatpush1.msra.mxu0 0.0
    %951 = vmatprep.subr.mxu0 0.0
    %952 = vmatpush1.msra.mxu0 0.0
    %953 = vmatprep.subr.mxu0 0.0
    %954 = vmatpush1.msra.mxu0 0.0
    %955 = vmatprep.subr.mxu0 0.0
    %956 = vmatpush1.msra.mxu0 0.0
    %957 = vmatprep.subr.mxu0 0.0
    %958 = vmatpush1.msra.mxu0 0.0
    %959 = vmatprep.subr.mxu0 0.0
    %960 = vmatpush1.msra.mxu0 0.0
    %961 = vmatprep.mubr.f32.mxu0 0.0
    %962 = vmatmul.mubr.f32.gmra.mrb[0].mxu0 %v895
    %v963 = vpop.f32.mrb[0].mxu0
    %v964 = vadd.f32 %v58, %v963
    %v965 = vpop.f32.mrb[0].mxu0
    %966 = vdwg.mxu0
    %v967 = vadd.f32 %v889, %v964
    %v968 = vmul.f32 %v967, 0.5
    %v969 = vtanh.pop %v968
    %v970 = vmul.f32 %v969, 0.5
    %v971 = vadd.f32 %v970, 0.5
    %973 = vrot.lane.b32.xlu0 %v964, 64
    %v974 = vpop.permute.xlu0 %973
    %v976 = vmul.f32 %v971, %v974
    %978 = vrot.lane.b32.xlu0 %v976, 64
    %v979 = vpop.permute.xlu0 %978
    %v981 = vadd.f32 %v889, %v979
    %v982 = vtanh.pop %v981
    %v983 = vsub.f32 1.0, %v971
    %985 = vrot.lane.b32.xlu0 %v982, 96
    %v986 = vpop.permute.xlu0 %985
    %v988 = vmul.f32 %v983, %v986
    %v989 = vmul.f32 %v971, 0.0
    %v990 = vadd.f32 %v988, %v989
    %992 = vrot.lane.b32.xlu0 %v990, 96
    %v993 = vpop.permute.xlu0 %992
    %v994 = vsel %vm65, %v993, 0
    %996 = vmatprep.subr.mxu0 0.0
    %997 = vmatpush1.msra.mxu0 %v51
    %998 = vmatprep.subr.mxu0 0.0
    %999 = vmatpush1.msra.mxu0 %v52
    %1000 = vmatprep.subr.mxu0 0.0
    %1001 = vmatpush1.msra.mxu0 %v53
    %1002 = vmatprep.subr.mxu0 0.0
    %1003 = vmatpush1.msra.mxu0 %v54
    %1004 = vmatprep.subr.mxu0 0.0
    %1005 = vmatpush1.msra.mxu0 0.0
    %1006 = vmatprep.subr.mxu0 0.0
    %1007 = vmatpush1.msra.mxu0 0.0
    %1008 = vmatprep.subr.mxu0 0.0
    %1009 = vmatpush1.msra.mxu0 0.0
    %1010 = vmatprep.subr.mxu0 0.0
    %1011 = vmatpush1.msra.mxu0 0.0
    %1012 = vmatprep.subr.mxu0 0.0
    %1013 = vmatpush1.msra.mxu0 0.0
    %1014 = vmatprep.subr.mxu0 0.0
    %1015 = vmatpush1.msra.mxu0 0.0
    %1016 = vmatprep.subr.mxu0 0.0
    %1017 = vmatpush1.msra.mxu0 0.0
    %1018 = vmatprep.subr.mxu0 0.0
    %1019 = vmatpush1.msra.mxu0 0.0
    %1020 = vmatprep.subr.mxu0 0.0
    %1021 = vmatpush1.msra.mxu0 0.0
    %1022 = vmatprep.subr.mxu0 0.0
    %1023 = vmatpush1.msra.mxu0 0.0
    %1024 = vmatprep.subr.mxu0 0.0
    %1025 = vmatpush1.msra.mxu0 0.0
    %1026 = vmatprep.subr.mxu0 0.0
    %1027 = vmatpush1.msra.mxu0 0.0
    %1028 = vmatprep.subr.mxu0 0.0
    %1029 = vmatpush1.msra.mxu0 0.0
    %1030 = vmatprep.subr.mxu0 0.0
    %1031 = vmatpush1.msra.mxu0 0.0
    %1032 = vmatprep.subr.mxu0 0.0
    %1033 = vmatpush1.msra.mxu0 0.0
    %1034 = vmatprep.subr.mxu0 0.0
    %1035 = vmatpush1.msra.mxu0 0.0
    %1036 = vmatprep.subr.mxu0 0.0
    %1037 = vmatpush1.msra.mxu0 0.0
    %1038 = vmatprep.subr.mxu0 0.0
    %1039 = vmatpush1.msra.mxu0 0.0
    %1040 = vmatprep.subr.mxu0 0.0
    %1041 = vmatpush1.msra.mxu0 0.0
    %1042 = vmatprep.subr.mxu0 0.0
    %1043 = vmatpush1.msra.mxu0 0.0
    %1044 = vmatprep.subr.mxu0 0.0
    %1045 = vmatpush1.msra.mxu0 0.0
    %1046 = vmatprep.subr.mxu0 0.0
    %1047 = vmatpush1.msra.mxu0 0.0
    %1048 = vmatprep.subr.mxu0 0.0
    %1049 = vmatpush1.msra.mxu0 0.0
    %1050 = vmatprep.subr.mxu0 0.0
    %1051 = vmatpush1.msra.mxu0 0.0
    %1052 = vmatprep.subr.mxu0 0.0
    %1053 = vmatpush1.msra.mxu0 0.0
    %1054 = vmatprep.subr.mxu0 0.0
    %1055 = vmatpush1.msra.mxu0 0.0
    %1056 = vmatprep.subr.mxu0 0.0
    %1057 = vmatpush1.msra.mxu0 0.0
    %1058 = vmatprep.subr.mxu0 0.0
    %1059 = vmatpush1.msra.mxu0 0.0
    %1060 = vmatprep.mubr.f32.mxu0 0.0
    %1061 = vmatmul.mubr.f32.gmra.mrb[0].mxu0 %v994
    %v1062 = vpop.f32.mrb[0].mxu0
    %v1063 = vadd.f32 %v58, %v1062
    %v1064 = vpop.f32.mrb[0].mxu0
    %1065 = vdwg.mxu0
    %v1067 = vrot.slane %v1063, 7
    %v1069 = vadd.f32 %v889, %v1067
    %v1070 = vmul.f32 %v1069, 0.5
    %v1071 = vtanh.pop %v1070
    %v1072 = vmul.f32 %v1071, 0.5
    %v1073 = vadd.f32 %v1072, 0.5
    %1074 = vrot.lane.b32.xlu0 %v1067, 64
    %v1075 = vpop.permute.xlu0 %1074
    %v1077 = vmul.f32 %v1073, %v1075
    %1079 = vrot.lane.b32.xlu0 %v1077, 64
    %v1080 = vpop.permute.xlu0 %1079
    %v1082 = vadd.f32 %v889, %v1080
    %v1083 = vtanh.pop %v1082
    %v1084 = vsub.f32 1.0, %v1073
    %1086 = vrot.lane.b32.xlu0 %v1083, 96
    %v1087 = vpop.permute.xlu0 %1086
    %v1089 = vmul.f32 %v1084, %v1087
    %v1090 = vrot.slane %v990, 7
    %v1092 = vmul.f32 %v1073, %v1090
    %v1093 = vadd.f32 %v1089, %v1092
    %v1095 = vrot.slane %v1093, 1
    %1096 = vrot.lane.b32.xlu0 %v1095, 96
    %v1097 = vpop.permute.xlu0 %1096
    %v1098 = vsel %vm65, %v1097, 0
    %1100 = vmatprep.subr.mxu0 0.0
    %1101 = vmatpush1.msra.mxu0 %v51
    %1102 = vmatprep.subr.mxu0 0.0
    %1103 = vmatpush1.msra.mxu0 %v52
    %1104 = vmatprep.subr.mxu0 0.0
    %1105 = vmatpush1.msra.mxu0 %v53
    %1106 = vmatprep.subr.mxu0 0.0
    %1107 = vmatpush1.msra.mxu0 %v54
    %1108 = vmatprep.subr.mxu0 0.0
    %1109 = vmatpush1.msra.mxu0 0.0
    %1110 = vmatprep.subr.mxu0 0.0
    %1111 = vmatpush1.msra.mxu0 0.0
    %1112 = vmatprep.subr.mxu0 0.0
    %1113 = vmatpush1.msra.mxu0 0.0
    %1114 = vmatprep.subr.mxu0 0.0
    %1115 = vmatpush1.msra.mxu0 0.0
    %1116 = vmatprep.subr.mxu0 0.0
    %1117 = vmatpush1.msra.mxu0 0.0
    %1118 = vmatprep.subr.mxu0 0.0
    %1119 = vmatpush1.msra.mxu0 0.0
    %1120 = vmatprep.subr.mxu0 0.0
    %1121 = vmatpush1.msra.mxu0 0.0
    %1122 = vmatprep.subr.mxu0 0.0
    %1123 = vmatpush1.msra.mxu0 0.0
    %1124 = vmatprep.subr.mxu0 0.0
    %1125 = vmatpush1.msra.mxu0 0.0
    %1126 = vmatprep.subr.mxu0 0.0
    %1127 = vmatpush1.msra.mxu0 0.0
    %1128 = vmatprep.subr.mxu0 0.0
    %1129 = vmatpush1.msra.mxu0 0.0
    %1130 = vmatprep.subr.mxu0 0.0
    %1131 = vmatpush1.msra.mxu0 0.0
    %1132 = vmatprep.subr.mxu0 0.0
    %1133 = vmatpush1.msra.mxu0 0.0
    %1134 = vmatprep.subr.mxu0 0.0
    %1135 = vmatpush1.msra.mxu0 0.0
    %1136 = vmatprep.subr.mxu0 0.0
    %1137 = vmatpush1.msra.mxu0 0.0
    %1138 = vmatprep.subr.mxu0 0.0
    %1139 = vmatpush1.msra.mxu0 0.0
    %1140 = vmatprep.subr.mxu0 0.0
    %1141 = vmatpush1.msra.mxu0 0.0
    %1142 = vmatprep.subr.mxu0 0.0
    %1143 = vmatpush1.msra.mxu0 0.0
    %1144 = vmatprep.subr.mxu0 0.0
    %1145 = vmatpush1.msra.mxu0 0.0
    %1146 = vmatprep.subr.mxu0 0.0
    %1147 = vmatpush1.msra.mxu0 0.0
    %1148 = vmatprep.subr.mxu0 0.0
    %1149 = vmatpush1.msra.mxu0 0.0
    %1150 = vmatprep.subr.mxu0 0.0
    %1151 = vmatpush1.msra.mxu0 0.0
    %1152 = vmatprep.subr.mxu0 0.0
    %1153 = vmatpush1.msra.mxu0 0.0
    %1154 = vmatprep.subr.mxu0 0.0
    %1155 = vmatpush1.msra.mxu0 0.0
    %1156 = vmatprep.subr.mxu0 0.0
    %1157 = vmatpush1.msra.mxu0 0.0
    %1158 = vmatprep.subr.mxu0 0.0
    %1159 = vmatpush1.msra.mxu0 0.0
    %1160 = vmatprep.subr.mxu0 0.0
    %1161 = vmatpush1.msra.mxu0 0.0
    %1162 = vmatprep.subr.mxu0 0.0
    %1163 = vmatpush1.msra.mxu0 0.0
    %1164 = vmatprep.mubr.f32.mxu0 0.0
    %1165 = vmatmul.mubr.f32.gmra.mrb[0].mxu0 %v1098
    %v1166 = vpop.f32.mrb[0].mxu0
    %v1167 = vadd.f32 %v58, %v1166
    %v1168 = vpop.f32.mrb[0].mxu0
    %1169 = vdwg.mxu0
    %v1171 = vrot.slane %v1167, 6
    %v1173 = vadd.f32 %v889, %v1171
    %v1174 = vmul.f32 %v1173, 0.5
    %v1175 = vtanh.pop %v1174
    %v1176 = vmul.f32 %v1175, 0.5
    %v1177 = vadd.f32 %v1176, 0.5
    %1178 = vrot.lane.b32.xlu0 %v1171, 64
    %v1179 = vpop.permute.xlu0 %1178
    %v1181 = vmul.f32 %v1177, %v1179
    %1183 = vrot.lane.b32.xlu0 %v1181, 64
    %v1184 = vpop.permute.xlu0 %1183
    %v1186 = vadd.f32 %v889, %v1184
    %v1187 = vtanh.pop %v1186
    %v1188 = vsub.f32 1.0, %v1177
    %1190 = vrot.lane.b32.xlu0 %v1187, 96
    %v1191 = vpop.permute.xlu0 %1190
    %v1193 = vmul.f32 %v1188, %v1191
    %v1194 = vrot.slane %v1093, 7
    %v1196 = vmul.f32 %v1177, %v1194
    %v1197 = vadd.f32 %v1193, %v1196
    %v1199 = vrot.slane %v1197, 2
    %1200 = vrot.lane.b32.xlu0 %v1199, 96
    %v1201 = vpop.permute.xlu0 %1200
    %v1202 = vsel %vm65, %v1201, 0
    %1204 = vmatprep.subr.mxu0 0.0
    %1205 = vmatpush1.msra.mxu0 %v51
    %1206 = vmatprep.subr.mxu0 0.0
    %1207 = vmatpush1.msra.mxu0 %v52
    %1208 = vmatprep.subr.mxu0 0.0
    %1209 = vmatpush1.msra.mxu0 %v53
    %1210 = vmatprep.subr.mxu0 0.0
    %1211 = vmatpush1.msra.mxu0 %v54
    %1212 = vmatprep.subr.mxu0 0.0
    %1213 = vmatpush1.msra.mxu0 0.0
    %1214 = vmatprep.subr.mxu0 0.0
    %1215 = vmatpush1.msra.mxu0 0.0
    %1216 = vmatprep.subr.mxu0 0.0
    %1217 = vmatpush1.msra.mxu0 0.0
    %1218 = vmatprep.subr.mxu0 0.0
    %1219 = vmatpush1.msra.mxu0 0.0
    %1220 = vmatprep.subr.mxu0 0.0
    %1221 = vmatpush1.msra.mxu0 0.0
    %1222 = vmatprep.subr.mxu0 0.0
    %1223 = vmatpush1.msra.mxu0 0.0
    %1224 = vmatprep.subr.mxu0 0.0
    %1225 = vmatpush1.msra.mxu0 0.0
    %1226 = vmatprep.subr.mxu0 0.0
    %1227 = vmatpush1.msra.mxu0 0.0
    %1228 = vmatprep.subr.mxu0 0.0
    %1229 = vmatpush1.msra.mxu0 0.0
    %1230 = vmatprep.subr.mxu0 0.0
    %1231 = vmatpush1.msra.mxu0 0.0
    %1232 = vmatprep.subr.mxu0 0.0
    %1233 = vmatpush1.msra.mxu0 0.0
    %1234 = vmatprep.subr.mxu0 0.0
    %1235 = vmatpush1.msra.mxu0 0.0
    %1236 = vmatprep.subr.mxu0 0.0
    %1237 = vmatpush1.msra.mxu0 0.0
    %1238 = vmatprep.subr.mxu0 0.0
    %1239 = vmatpush1.msra.mxu0 0.0
    %1240 = vmatprep.subr.mxu0 0.0
    %1241 = vmatpush1.msra.mxu0 0.0
    %1242 = vmatprep.subr.mxu0 0.0
    %1243 = vmatpush1.msra.mxu0 0.0
    %1244 = vmatprep.subr.mxu0 0.0
    %1245 = vmatpush1.msra.mxu0 0.0
    %1246 = vmatprep.subr.mxu0 0.0
    %1247 = vmatpush1.msra.mxu0 0.0
    %1248 = vmatprep.subr.mxu0 0.0
    %1249 = vmatpush1.msra.mxu0 0.0
    %1250 = vmatprep.subr.mxu0 0.0
    %1251 = vmatpush1.msra.mxu0 0.0
    %1252 = vmatprep.subr.mxu0 0.0
    %1253 = vmatpush1.msra.mxu0 0.0
    %1254 = vmatprep.subr.mxu0 0.0
    %1255 = vmatpush1.msra.mxu0 0.0
    %1256 = vmatprep.subr.mxu0 0.0
    %1257 = vmatpush1.msra.mxu0 0.0
    %1258 = vmatprep.subr.mxu0 0.0
    %1259 = vmatpush1.msra.mxu0 0.0
    %1260 = vmatprep.subr.mxu0 0.0
    %1261 = vmatpush1.msra.mxu0 0.0
    %1262 = vmatprep.subr.mxu0 0.0
    %1263 = vmatpush1.msra.mxu0 0.0
    %1264 = vmatprep.subr.mxu0 0.0
    %1265 = vmatpush1.msra.mxu0 0.0
    %1266 = vmatprep.subr.mxu0 0.0
    %1267 = vmatpush1.msra.mxu0 0.0
    %1268 = vmatprep.mubr.f32.mxu0 0.0
    %1269 = vmatmul.mubr.f32.gmra.mrb[0].mxu0 %v1202
    %v1270 = vpop.f32.mrb[0].mxu0
    %v1271 = vadd.f32 %v58, %v1270
    %v1272 = vpop.f32.mrb[0].mxu0
    %1273 = vdwg.mxu0
    %v1275 = vrot.slane %v1271, 5
    %v1277 = vadd.f32 %v889, %v1275
    %v1278 = vmul.f32 %v1277, 0.5
    %v1279 = vtanh.pop %v1278
    %v1280 = vmul.f32 %v1279, 0.5
    %v1281 = vadd.f32 %v1280, 0.5
    %1282 = vrot.lane.b32.xlu0 %v1275, 64
    %v1283 = vpop.permute.xlu0 %1282
    %v1285 = vmul.f32 %v1281, %v1283
    %1287 = vrot.lane.b32.xlu0 %v1285, 64
    %v1288 = vpop.permute.xlu0 %1287
    %v1290 = vadd.f32 %v889, %v1288
    %v1291 = vtanh.pop %v1290
    %v1292 = vsub.f32 1.0, %v1281
    %1294 = vrot.lane.b32.xlu0 %v1291, 96
    %v1295 = vpop.permute.xlu0 %1294
    %v1297 = vmul.f32 %v1292, %v1295
    %v1298 = vrot.slane %v1197, 7
    %v1300 = vmul.f32 %v1281, %v1298
    %v1301 = vadd.f32 %v1297, %v1300
    %v1303 = vrot.slane %v1301, 3
    %1304 = vrot.lane.b32.xlu0 %v1303, 96
    %v1305 = vpop.permute.xlu0 %1304
    %v1306 = vsel %vm65, %v1305, 0
    %1308 = vmatprep.subr.mxu0 0.0
    %1309 = vmatpush1.msra.mxu0 %v51
    %1310 = vmatprep.subr.mxu0 0.0
    %1311 = vmatpush1.msra.mxu0 %v52
    %1312 = vmatprep.subr.mxu0 0.0
    %1313 = vmatpush1.msra.mxu0 %v53
    %1314 = vmatprep.subr.mxu0 0.0
    %1315 = vmatpush1.msra.mxu0 %v54
    %1316 = vmatprep.subr.mxu0 0.0
    %1317 = vmatpush1.msra.mxu0 0.0
    %1318 = vmatprep.subr.mxu0 0.0
    %1319 = vmatpush1.msra.mxu0 0.0
    %1320 = vmatprep.subr.mxu0 0.0
    %1321 = vmatpush1.msra.mxu0 0.0
    %1322 = vmatprep.subr.mxu0 0.0
    %1323 = vmatpush1.msra.mxu0 0.0
    %1324 = vmatprep.subr.mxu0 0.0
    %1325 = vmatpush1.msra.mxu0 0.0
    %1326 = vmatprep.subr.mxu0 0.0
    %1327 = vmatpush1.msra.mxu0 0.0
    %1328 = vmatprep.subr.mxu0 0.0
    %1329 = vmatpush1.msra.mxu0 0.0
    %1330 = vmatprep.subr.mxu0 0.0
    %1331 = vmatpush1.msra.mxu0 0.0
    %1332 = vmatprep.subr.mxu0 0.0
    %1333 = vmatpush1.msra.mxu0 0.0
    %1334 = vmatprep.subr.mxu0 0.0
    %1335 = vmatpush1.msra.mxu0 0.0
    %1336 = vmatprep.subr.mxu0 0.0
    %1337 = vmatpush1.msra.mxu0 0.0
    %1338 = vmatprep.subr.mxu0 0.0
    %1339 = vmatpush1.msra.mxu0 0.0
    %1340 = vmatprep.subr.mxu0 0.0
    %1341 = vmatpush1.msra.mxu0 0.0
    %1342 = vmatprep.subr.mxu0 0.0
    %1343 = vmatpush1.msra.mxu0 0.0
    %1344 = vmatprep.subr.mxu0 0.0
    %1345 = vmatpush1.msra.mxu0 0.0
    %1346 = vmatprep.subr.mxu0 0.0
    %1347 = vmatpush1.msra.mxu0 0.0
    %1348 = vmatprep.subr.mxu0 0.0
    %1349 = vmatpush1.msra.mxu0 0.0
    %1350 = vmatprep.subr.mxu0 0.0
    %1351 = vmatpush1.msra.mxu0 0.0
    %1352 = vmatprep.subr.mxu0 0.0
    %1353 = vmatpush1.msra.mxu0 0.0
    %1354 = vmatprep.subr.mxu0 0.0
    %1355 = vmatpush1.msra.mxu0 0.0
    %1356 = vmatprep.subr.mxu0 0.0
    %1357 = vmatpush1.msra.mxu0 0.0
    %1358 = vmatprep.subr.mxu0 0.0
    %1359 = vmatpush1.msra.mxu0 0.0
    %1360 = vmatprep.subr.mxu0 0.0
    %1361 = vmatpush1.msra.mxu0 0.0
    %1362 = vmatprep.subr.mxu0 0.0
    %1363 = vmatpush1.msra.mxu0 0.0
    %1364 = vmatprep.subr.mxu0 0.0
    %1365 = vmatpush1.msra.mxu0 0.0
    %1366 = vmatprep.subr.mxu0 0.0
    %1367 = vmatpush1.msra.mxu0 0.0
    %1368 = vmatprep.subr.mxu0 0.0
    %1369 = vmatpush1.msra.mxu0 0.0
    %1370 = vmatprep.subr.mxu0 0.0
    %1371 = vmatpush1.msra.mxu0 0.0
    %1372 = vmatprep.mubr.f32.mxu0 0.0
    %1373 = vmatmul.mubr.f32.gmra.mrb[0].mxu0 %v1306
    %v1374 = vpop.f32.mrb[0].mxu0
    %v1375 = vadd.f32 %v58, %v1374
    %v1376 = vpop.f32.mrb[0].mxu0
    %1377 = vdwg.mxu0
    %v1379 = vrot.slane %v1375, 4
    %v1381 = vadd.f32 %v889, %v1379
    %v1382 = vmul.f32 %v1381, 0.5
    %v1383 = vtanh.pop %v1382
    %v1384 = vmul.f32 %v1383, 0.5
    %v1385 = vadd.f32 %v1384, 0.5
    %1386 = vrot.lane.b32.xlu0 %v1379, 64
    %v1387 = vpop.permute.xlu0 %1386
    %v1389 = vmul.f32 %v1385, %v1387
    %1391 = vrot.lane.b32.xlu0 %v1389, 64
    %v1392 = vpop.permute.xlu0 %1391
    %v1394 = vadd.f32 %v889, %v1392
    %v1395 = vtanh.pop %v1394
    %v1396 = vsub.f32 1.0, %v1385
    %1398 = vrot.lane.b32.xlu0 %v1395, 96
    %v1399 = vpop.permute.xlu0 %1398
    %v1401 = vmul.f32 %v1396, %v1399
    %v1402 = vrot.slane %v1301, 7
    %v1404 = vmul.f32 %v1385, %v1402
    %v1405 = vadd.f32 %v1401, %v1404
    %v1407 = vrot.slane %v1405, 4
    %1408 = vrot.lane.b32.xlu0 %v1407, 96
    %v1409 = vpop.permute.xlu0 %1408
    %v1410 = vsel %vm65, %v1409, 0
    %1412 = vmatprep.subr.mxu0 0.0
    %1413 = vmatpush1.msra.mxu0 %v51
    %1414 = vmatprep.subr.mxu0 0.0
    %1415 = vmatpush1.msra.mxu0 %v52
    %1416 = vmatprep.subr.mxu0 0.0
    %1417 = vmatpush1.msra.mxu0 %v53
    %1418 = vmatprep.subr.mxu0 0.0
    %1419 = vmatpush1.msra.mxu0 %v54
    %1420 = vmatprep.subr.mxu0 0.0
    %1421 = vmatpush1.msra.mxu0 0.0
    %1422 = vmatprep.subr.mxu0 0.0
    %1423 = vmatpush1.msra.mxu0 0.0
    %1424 = vmatprep.subr.mxu0 0.0
    %1425 = vmatpush1.msra.mxu0 0.0
    %1426 = vmatprep.subr.mxu0 0.0
    %1427 = vmatpush1.msra.mxu0 0.0
    %1428 = vmatprep.subr.mxu0 0.0
    %1429 = vmatpush1.msra.mxu0 0.0
    %1430 = vmatprep.subr.mxu0 0.0
    %1431 = vmatpush1.msra.mxu0 0.0
    %1432 = vmatprep.subr.mxu0 0.0
    %1433 = vmatpush1.msra.mxu0 0.0
    %1434 = vmatprep.subr.mxu0 0.0
    %1435 = vmatpush1.msra.mxu0 0.0
    %1436 = vmatprep.subr.mxu0 0.0
    %1437 = vmatpush1.msra.mxu0 0.0
    %1438 = vmatprep.subr.mxu0 0.0
    %1439 = vmatpush1.msra.mxu0 0.0
    %1440 = vmatprep.subr.mxu0 0.0
    %1441 = vmatpush1.msra.mxu0 0.0
    %1442 = vmatprep.subr.mxu0 0.0
    %1443 = vmatpush1.msra.mxu0 0.0
    %1444 = vmatprep.subr.mxu0 0.0
    %1445 = vmatpush1.msra.mxu0 0.0
    %1446 = vmatprep.subr.mxu0 0.0
    %1447 = vmatpush1.msra.mxu0 0.0
    %1448 = vmatprep.subr.mxu0 0.0
    %1449 = vmatpush1.msra.mxu0 0.0
    %1450 = vmatprep.subr.mxu0 0.0
    %1451 = vmatpush1.msra.mxu0 0.0
    %1452 = vmatprep.subr.mxu0 0.0
    %1453 = vmatpush1.msra.mxu0 0.0
    %1454 = vmatprep.subr.mxu0 0.0
    %1455 = vmatpush1.msra.mxu0 0.0
    %1456 = vmatprep.subr.mxu0 0.0
    %1457 = vmatpush1.msra.mxu0 0.0
    %1458 = vmatprep.subr.mxu0 0.0
    %1459 = vmatpush1.msra.mxu0 0.0
    %1460 = vmatprep.subr.mxu0 0.0
    %1461 = vmatpush1.msra.mxu0 0.0
    %1462 = vmatprep.subr.mxu0 0.0
    %1463 = vmatpush1.msra.mxu0 0.0
    %1464 = vmatprep.subr.mxu0 0.0
    %1465 = vmatpush1.msra.mxu0 0.0
    %1466 = vmatprep.subr.mxu0 0.0
    %1467 = vmatpush1.msra.mxu0 0.0
    %1468 = vmatprep.subr.mxu0 0.0
    %1469 = vmatpush1.msra.mxu0 0.0
    %1470 = vmatprep.subr.mxu0 0.0
    %1471 = vmatpush1.msra.mxu0 0.0
    %1472 = vmatprep.subr.mxu0 0.0
    %1473 = vmatpush1.msra.mxu0 0.0
    %1474 = vmatprep.subr.mxu0 0.0
    %1475 = vmatpush1.msra.mxu0 0.0
    %1476 = vmatprep.mubr.f32.mxu0 0.0
    %1477 = vmatmul.mubr.f32.gmra.mrb[0].mxu0 %v1410
    %v1478 = vpop.f32.mrb[0].mxu0
    %v1479 = vadd.f32 %v58, %v1478
    %v1480 = vpop.f32.mrb[0].mxu0
    %1481 = vdwg.mxu0
    %v1483 = vrot.slane %v1479, 3
    %v1485 = vadd.f32 %v889, %v1483
    %v1486 = vmul.f32 %v1485, 0.5
    %v1487 = vtanh.pop %v1486
    %v1488 = vmul.f32 %v1487, 0.5
    %v1489 = vadd.f32 %v1488, 0.5
    %1490 = vrot.lane.b32.xlu0 %v1483, 64
    %v1491 = vpop.permute.xlu0 %1490
    %v1493 = vmul.f32 %v1489, %v1491
    %1495 = vrot.lane.b32.xlu0 %v1493, 64
    %v1496 = vpop.permute.xlu0 %1495
    %v1498 = vadd.f32 %v889, %v1496
    %v1499 = vtanh.pop %v1498
    %v1500 = vsub.f32 1.0, %v1489
    %1502 = vrot.lane.b32.xlu0 %v1499, 96
    %v1503 = vpop.permute.xlu0 %1502
    %v1505 = vmul.f32 %v1500, %v1503
    %v1506 = vrot.slane %v1405, 7
    %v1508 = vmul.f32 %v1489, %v1506
    %v1509 = vadd.f32 %v1505, %v1508
    %v1511 = vrot.slane %v1509, 5
    %1512 = vrot.lane.b32.xlu0 %v1511, 96
    %v1513 = vpop.permute.xlu0 %1512
    %v1514 = vsel %vm65, %v1513, 0
    %1516 = vmatprep.subr.mxu0 0.0
    %1517 = vmatpush1.msra.mxu0 %v51
    %1518 = vmatprep.subr.mxu0 0.0
    %1519 = vmatpush1.msra.mxu0 %v52
    %1520 = vmatprep.subr.mxu0 0.0
    %1521 = vmatpush1.msra.mxu0 %v53
    %1522 = vmatprep.subr.mxu0 0.0
    %1523 = vmatpush1.msra.mxu0 %v54
    %1524 = vmatprep.subr.mxu0 0.0
    %1525 = vmatpush1.msra.mxu0 0.0
    %1526 = vmatprep.subr.mxu0 0.0
    %1527 = vmatpush1.msra.mxu0 0.0
    %1528 = vmatprep.subr.mxu0 0.0
    %1529 = vmatpush1.msra.mxu0 0.0
    %1530 = vmatprep.subr.mxu0 0.0
    %1531 = vmatpush1.msra.mxu0 0.0
    %1532 = vmatprep.subr.mxu0 0.0
    %1533 = vmatpush1.msra.mxu0 0.0
    %1534 = vmatprep.subr.mxu0 0.0
    %1535 = vmatpush1.msra.mxu0 0.0
    %1536 = vmatprep.subr.mxu0 0.0
    %1537 = vmatpush1.msra.mxu0 0.0
    %1538 = vmatprep.subr.mxu0 0.0
    %1539 = vmatpush1.msra.mxu0 0.0
    %1540 = vmatprep.subr.mxu0 0.0
    %1541 = vmatpush1.msra.mxu0 0.0
    %1542 = vmatprep.subr.mxu0 0.0
    %1543 = vmatpush1.msra.mxu0 0.0
    %1544 = vmatprep.subr.mxu0 0.0
    %1545 = vmatpush1.msra.mxu0 0.0
    %1546 = vmatprep.subr.mxu0 0.0
    %1547 = vmatpush1.msra.mxu0 0.0
    %1548 = vmatprep.subr.mxu0 0.0
    %1549 = vmatpush1.msra.mxu0 0.0
    %1550 = vmatprep.subr.mxu0 0.0
    %1551 = vmatpush1.msra.mxu0 0.0
    %1552 = vmatprep.subr.mxu0 0.0
    %1553 = vmatpush1.msra.mxu0 0.0
    %1554 = vmatprep.subr.mxu0 0.0
    %1555 = vmatpush1.msra.mxu0 0.0
    %1556 = vmatprep.subr.mxu0 0.0
    %1557 = vmatpush1.msra.mxu0 0.0
    %1558 = vmatprep.subr.mxu0 0.0
    %1559 = vmatpush1.msra.mxu0 0.0
    %1560 = vmatprep.subr.mxu0 0.0
    %1561 = vmatpush1.msra.mxu0 0.0
    %1562 = vmatprep.subr.mxu0 0.0
    %1563 = vmatpush1.msra.mxu0 0.0
    %1564 = vmatprep.subr.mxu0 0.0
    %1565 = vmatpush1.msra.mxu0 0.0
    %1566 = vmatprep.subr.mxu0 0.0
    %1567 = vmatpush1.msra.mxu0 0.0
    %1568 = vmatprep.subr.mxu0 0.0
    %1569 = vmatpush1.msra.mxu0 0.0
    %1570 = vmatprep.subr.mxu0 0.0
    %1571 = vmatpush1.msra.mxu0 0.0
    %1572 = vmatprep.subr.mxu0 0.0
    %1573 = vmatpush1.msra.mxu0 0.0
    %1574 = vmatprep.subr.mxu0 0.0
    %1575 = vmatpush1.msra.mxu0 0.0
    %1576 = vmatprep.subr.mxu0 0.0
    %1577 = vmatpush1.msra.mxu0 0.0
    %1578 = vmatprep.subr.mxu0 0.0
    %1579 = vmatpush1.msra.mxu0 0.0
    %1580 = vmatprep.mubr.f32.mxu0 0.0
    %1581 = vmatmul.mubr.f32.gmra.mrb[0].mxu0 %v1514
    %v1582 = vpop.f32.mrb[0].mxu0
    %v1583 = vadd.f32 %v58, %v1582
    %v1584 = vpop.f32.mrb[0].mxu0
    %1585 = vdwg.mxu0
    %v1587 = vrot.slane %v1583, 2
    %v1589 = vadd.f32 %v889, %v1587
    %v1590 = vmul.f32 %v1589, 0.5
    %v1591 = vtanh.pop %v1590
    %v1592 = vmul.f32 %v1591, 0.5
    %v1593 = vadd.f32 %v1592, 0.5
    %1594 = vrot.lane.b32.xlu0 %v1587, 64
    %v1595 = vpop.permute.xlu0 %1594
    %v1597 = vmul.f32 %v1593, %v1595
    %1599 = vrot.lane.b32.xlu0 %v1597, 64
    %v1600 = vpop.permute.xlu0 %1599
    %v1602 = vadd.f32 %v889, %v1600
    %v1603 = vtanh.pop %v1602
    %v1604 = vsub.f32 1.0, %v1593
    %1606 = vrot.lane.b32.xlu0 %v1603, 96
    %v1607 = vpop.permute.xlu0 %1606
    %v1609 = vmul.f32 %v1604, %v1607
    %v1610 = vrot.slane %v1509, 7
    %v1612 = vmul.f32 %v1593, %v1610
    %v1613 = vadd.f32 %v1609, %v1612
    %v1615 = vrot.slane %v1613, 6
    %1616 = vrot.lane.b32.xlu0 %v1615, 96
    %v1617 = vpop.permute.xlu0 %1616
    %v1618 = vsel %vm65, %v1617, 0
    %1620 = vmatprep.subr.mxu0 0.0
    %1621 = vmatpush1.msra.mxu0 %v51
    %1622 = vmatprep.subr.mxu0 0.0
    %1623 = vmatpush1.msra.mxu0 %v52
    %1624 = vmatprep.subr.mxu0 0.0
    %1625 = vmatpush1.msra.mxu0 %v53
    %1626 = vmatprep.subr.mxu0 0.0
    %1627 = vmatpush1.msra.mxu0 %v54
    %1628 = vmatprep.subr.mxu0 0.0
    %1629 = vmatpush1.msra.mxu0 0.0
    %1630 = vmatprep.subr.mxu0 0.0
    %1631 = vmatpush1.msra.mxu0 0.0
    %1632 = vmatprep.subr.mxu0 0.0
    %1633 = vmatpush1.msra.mxu0 0.0
    %1634 = vmatprep.subr.mxu0 0.0
    %1635 = vmatpush1.msra.mxu0 0.0
    %1636 = vmatprep.subr.mxu0 0.0
    %1637 = vmatpush1.msra.mxu0 0.0
    %1638 = vmatprep.subr.mxu0 0.0
    %1639 = vmatpush1.msra.mxu0 0.0
    %1640 = vmatprep.subr.mxu0 0.0
    %1641 = vmatpush1.msra.mxu0 0.0
    %1642 = vmatprep.subr.mxu0 0.0
    %1643 = vmatpush1.msra.mxu0 0.0
    %1644 = vmatprep.subr.mxu0 0.0
    %1645 = vmatpush1.msra.mxu0 0.0
    %1646 = vmatprep.subr.mxu0 0.0
    %1647 = vmatpush1.msra.mxu0 0.0
    %1648 = vmatprep.subr.mxu0 0.0
    %1649 = vmatpush1.msra.mxu0 0.0
    %1650 = vmatprep.subr.mxu0 0.0
    %1651 = vmatpush1.msra.mxu0 0.0
    %1652 = vmatprep.subr.mxu0 0.0
    %1653 = vmatpush1.msra.mxu0 0.0
    %1654 = vmatprep.subr.mxu0 0.0
    %1655 = vmatpush1.msra.mxu0 0.0
    %1656 = vmatprep.subr.mxu0 0.0
    %1657 = vmatpush1.msra.mxu0 0.0
    %1658 = vmatprep.subr.mxu0 0.0
    %1659 = vmatpush1.msra.mxu0 0.0
    %1660 = vmatprep.subr.mxu0 0.0
    %1661 = vmatpush1.msra.mxu0 0.0
    %1662 = vmatprep.subr.mxu0 0.0
    %1663 = vmatpush1.msra.mxu0 0.0
    %1664 = vmatprep.subr.mxu0 0.0
    %1665 = vmatpush1.msra.mxu0 0.0
    %1666 = vmatprep.subr.mxu0 0.0
    %1667 = vmatpush1.msra.mxu0 0.0
    %1668 = vmatprep.subr.mxu0 0.0
    %1669 = vmatpush1.msra.mxu0 0.0
    %1670 = vmatprep.subr.mxu0 0.0
    %1671 = vmatpush1.msra.mxu0 0.0
    %1672 = vmatprep.subr.mxu0 0.0
    %1673 = vmatpush1.msra.mxu0 0.0
    %1674 = vmatprep.subr.mxu0 0.0
    %1675 = vmatpush1.msra.mxu0 0.0
    %1676 = vmatprep.subr.mxu0 0.0
    %1677 = vmatpush1.msra.mxu0 0.0
    %1678 = vmatprep.subr.mxu0 0.0
    %1679 = vmatpush1.msra.mxu0 0.0
    %1680 = vmatprep.subr.mxu0 0.0
    %1681 = vmatpush1.msra.mxu0 0.0
    %1682 = vmatprep.subr.mxu0 0.0
    %1683 = vmatpush1.msra.mxu0 0.0
    %1684 = vmatprep.mubr.f32.mxu0 0.0
    %1685 = vmatmul.mubr.f32.gmra.mrb[0].mxu0 %v1618
    %v1686 = vpop.f32.mrb[0].mxu0
    %v1687 = vadd.f32 %v58, %v1686
    %v1688 = vpop.f32.mrb[0].mxu0
    %1689 = vdwg.mxu0
    %v1691 = vrot.slane %v1687, 1
    %v1693 = vadd.f32 %v889, %v1691
    %v1694 = vmul.f32 %v1693, 0.5
    %v1695 = vtanh.pop %v1694
    %v1696 = vmul.f32 %v1695, 0.5
    %v1697 = vadd.f32 %v1696, 0.5
    %1698 = vrot.lane.b32.xlu0 %v1691, 64
    %v1699 = vpop.permute.xlu0 %1698
    %v1701 = vmul.f32 %v1697, %v1699
    %1703 = vrot.lane.b32.xlu0 %v1701, 64
    %v1704 = vpop.permute.xlu0 %1703
    %v1706 = vadd.f32 %v889, %v1704
    %v1707 = vtanh.pop %v1706
    %v1708 = vsub.f32 1.0, %v1697
    %1710 = vrot.lane.b32.xlu0 %v1707, 96
    %v1711 = vpop.permute.xlu0 %1710
    %v1713 = vmul.f32 %v1708, %v1711
    %v1714 = vrot.slane %v1613, 7
    %v1716 = vmul.f32 %v1697, %v1714
    %v1717 = vadd.f32 %v1713, %v1716
    %v1719 = vrot.slane %v1717, 7
    %1720 = vrot.lane.b32.xlu0 %v1719, 96
    %v1721 = vpop.permute.xlu0 %1720
    %1726 = vrot.lane.b32.xlu0 %v59, 96
    %v1727 = vpop.permute.xlu0 %1726
    %1728 = vrot.lane.b32.xlu0 %v60, 96
    %v1729 = vpop.permute.xlu0 %1728
    %1730 = vrot.lane.b32.xlu0 %v61, 96
    %v1731 = vpop.permute.xlu0 %1730
    %1732 = vrot.lane.b32.xlu0 %v62, 96
    %v1733 = vpop.permute.xlu0 %1732
    %v1738 = vsel %vm65, %v1721, 0
    %1740 = vmatprep.subr.mxu0 0.0
    %1741 = vmatpush1.msra.mxu0 %v1727
    %1742 = vmatprep.subr.mxu0 0.0
    %1743 = vmatpush1.msra.mxu0 %v1729
    %1744 = vmatprep.subr.mxu0 0.0
    %1745 = vmatpush1.msra.mxu0 %v1731
    %1746 = vmatprep.subr.mxu0 0.0
    %1747 = vmatpush1.msra.mxu0 %v1733
    %1748 = vmatprep.subr.mxu0 0.0
    %1749 = vmatpush1.msra.mxu0 0.0
    %1750 = vmatprep.subr.mxu0 0.0
    %1751 = vmatpush1.msra.mxu0 0.0
    %1752 = vmatprep.subr.mxu0 0.0
    %1753 = vmatpush1.msra.mxu0 0.0
    %1754 = vmatprep.subr.mxu0 0.0
    %1755 = vmatpush1.msra.mxu0 0.0
    %1756 = vmatprep.subr.mxu0 0.0
    %1757 = vmatpush1.msra.mxu0 0.0
    %1758 = vmatprep.subr.mxu0 0.0
    %1759 = vmatpush1.msra.mxu0 0.0
    %1760 = vmatprep.subr.mxu0 0.0
    %1761 = vmatpush1.msra.mxu0 0.0
    %1762 = vmatprep.subr.mxu0 0.0
    %1763 = vmatpush1.msra.mxu0 0.0
    %1764 = vmatprep.subr.mxu0 0.0
    %1765 = vmatpush1.msra.mxu0 0.0
    %1766 = vmatprep.subr.mxu0 0.0
    %1767 = vmatpush1.msra.mxu0 0.0
    %1768 = vmatprep.subr.mxu0 0.0
    %1769 = vmatpush1.msra.mxu0 0.0
    %1770 = vmatprep.subr.mxu0 0.0
    %1771 = vmatpush1.msra.mxu0 0.0
    %1772 = vmatprep.subr.mxu0 0.0
    %1773 = vmatpush1.msra.mxu0 0.0
    %1774 = vmatprep.subr.mxu0 0.0
    %1775 = vmatpush1.msra.mxu0 0.0
    %1776 = vmatprep.subr.mxu0 0.0
    %1777 = vmatpush1.msra.mxu0 0.0
    %1778 = vmatprep.subr.mxu0 0.0
    %1779 = vmatpush1.msra.mxu0 0.0
    %1780 = vmatprep.subr.mxu0 0.0
    %1781 = vmatpush1.msra.mxu0 0.0
    %1782 = vmatprep.subr.mxu0 0.0
    %1783 = vmatpush1.msra.mxu0 0.0
    %1784 = vmatprep.subr.mxu0 0.0
    %1785 = vmatpush1.msra.mxu0 0.0
    %1786 = vmatprep.subr.mxu0 0.0
    %1787 = vmatpush1.msra.mxu0 0.0
    %1788 = vmatprep.subr.mxu0 0.0
    %1789 = vmatpush1.msra.mxu0 0.0
    %1790 = vmatprep.subr.mxu0 0.0
    %1791 = vmatpush1.msra.mxu0 0.0
    %1792 = vmatprep.subr.mxu0 0.0
    %1793 = vmatpush1.msra.mxu0 0.0
    %1794 = vmatprep.subr.mxu0 0.0
    %1795 = vmatpush1.msra.mxu0 0.0
    %1796 = vmatprep.subr.mxu0 0.0
    %1797 = vmatpush1.msra.mxu0 0.0
    %1798 = vmatprep.subr.mxu0 0.0
    %1799 = vmatpush1.msra.mxu0 0.0
    %1800 = vmatprep.subr.mxu0 0.0
    %1801 = vmatpush1.msra.mxu0 0.0
    %1802 = vmatprep.subr.mxu0 0.0
    %1803 = vmatpush1.msra.mxu0 0.0
    %1804 = vmatprep.mubr.f32.mxu0 0.0
    %1805 = vmatmul.mubr.f32.gmra.mrb[0].mxu0 %v1738
    %v1806 = vpop.f32.mrb[0].mxu0
    %v1807 = vadd.f32 0.0, %v1806
    %v1808 = vpop.f32.mrb[0].mxu0
    %1809 = vdwg.mxu0
    %v1810 = vlaneseq
    %v1811 = vshrl.u32 %v1810, 7
    %v1812 = vsub.s32 0, %v1811
    %v1813 = vrot.slane %v1807, %v1812
    %1815 = vrot.lane.b32.xlu0 %v840, 96
    %v1816 = vpop.permute.xlu0 %1815
    %v1817 = vsel %vm65, %v1816, 0
    %1819 = vmatprep.subr.mxu0 0.0
    %1820 = vmatpush1.msra.mxu0 %v59
    %1821 = vmatprep.subr.mxu0 0.0
    %1822 = vmatpush1.msra.mxu0 %v60
    %1823 = vmatprep.subr.mxu0 0.0
    %1824 = vmatpush1.msra.mxu0 %v61
    %1825 = vmatprep.subr.mxu0 0.0
    %1826 = vmatpush1.msra.mxu0 %v62
    %1827 = vmatprep.subr.mxu0 0.0
    %1828 = vmatpush1.msra.mxu0 0.0
    %1829 = vmatprep.subr.mxu0 0.0
    %1830 = vmatpush1.msra.mxu0 0.0
    %1831 = vmatprep.subr.mxu0 0.0
    %1832 = vmatpush1.msra.mxu0 0.0
    %1833 = vmatprep.subr.mxu0 0.0
    %1834 = vmatpush1.msra.mxu0 0.0
    %1835 = vmatprep.subr.mxu0 0.0
    %1836 = vmatpush1.msra.mxu0 0.0
    %1837 = vmatprep.subr.mxu0 0.0
    %1838 = vmatpush1.msra.mxu0 0.0
    %1839 = vmatprep.subr.mxu0 0.0
    %1840 = vmatpush1.msra.mxu0 0.0
    %1841 = vmatprep.subr.mxu0 0.0
    %1842 = vmatpush1.msra.mxu0 0.0
    %1843 = vmatprep.subr.mxu0 0.0
    %1844 = vmatpush1.msra.mxu0 0.0
    %1845 = vmatprep.subr.mxu0 0.0
    %1846 = vmatpush1.msra.mxu0 0.0
    %1847 = vmatprep.subr.mxu0 0.0
    %1848 = vmatpush1.msra.mxu0 0.0
    %1849 = vmatprep.subr.mxu0 0.0
    %1850 = vmatpush1.msra.mxu0 0.0
    %1851 = vmatprep.subr.mxu0 0.0
    %1852 = vmatpush1.msra.mxu0 0.0
    %1853 = vmatprep.subr.mxu0 0.0
    %1854 = vmatpush1.msra.mxu0 0.0
    %1855 = vmatprep.subr.mxu0 0.0
    %1856 = vmatpush1.msra.mxu0 0.0
    %1857 = vmatprep.subr.mxu0 0.0
    %1858 = vmatpush1.msra.mxu0 0.0
    %1859 = vmatprep.subr.mxu0 0.0
    %1860 = vmatpush1.msra.mxu0 0.0
    %1861 = vmatprep.subr.mxu0 0.0
    %1862 = vmatpush1.msra.mxu0 0.0
    %1863 = vmatprep.subr.mxu0 0.0
    %1864 = vmatpush1.msra.mxu0 0.0
    %1865 = vmatprep.subr.mxu0 0.0
    %1866 = vmatpush1.msra.mxu0 0.0
    %1867 = vmatprep.subr.mxu0 0.0
    %1868 = vmatpush1.msra.mxu0 0.0
    %1869 = vmatprep.subr.mxu0 0.0
    %1870 = vmatpush1.msra.mxu0 0.0
    %1871 = vmatprep.subr.mxu0 0.0
    %1872 = vmatpush1.msra.mxu0 0.0
    %1873 = vmatprep.subr.mxu0 0.0
    %1874 = vmatpush1.msra.mxu0 0.0
    %1875 = vmatprep.subr.mxu0 0.0
    %1876 = vmatpush1.msra.mxu0 0.0
    %1877 = vmatprep.subr.mxu0 0.0
    %1878 = vmatpush1.msra.mxu0 0.0
    %1879 = vmatprep.subr.mxu0 0.0
    %1880 = vmatpush1.msra.mxu0 0.0
    %1881 = vmatprep.subr.mxu0 0.0
    %1882 = vmatpush1.msra.mxu0 0.0
    %1883 = vmatprep.mubr.f32.mxu0 0.0
    %1884 = vmatmul.mubr.f32.gmra.mrb[0].mxu0 %v1817
    %v1885 = vpop.f32.mrb[0].mxu0
    %v1886 = vadd.f32 %v1813, %v1885
    %v1887 = vpop.f32.mrb[0].mxu0
    %1888 = vdwg.mxu0
    %v1889 = vlaneseq
    %v1890 = vshrl.u32 %v1889, 7
    %v1891 = vsub.s32 0, %v1890
    %v1892 = vrot.slane %v63, %v1891
    %1894 = vrot.lane.b32.xlu0 %v1892, 64
    %v1895 = vpop.permute.xlu0 %1894
    %v1897 = vadd.f32 %v1886, %v1895
    %v1898 = vmax.f32 %v1897, 0.0
    %v1899 = vlaneseq
    %v1900 = vshrl.u32 %v1899, 7
    %v1901 = vsub.s32 0, %v1900
    %v1902 = vrot.slane %v64, %v1901
    %1903 = vrot.lane.b32.xlu0 %v59, 64
    %v1904 = vpop.permute.xlu0 %1903
    %1905 = vrot.lane.b32.xlu0 %v60, 64
    %v1906 = vpop.permute.xlu0 %1905
    %1907 = vrot.lane.b32.xlu0 %v61, 64
    %v1908 = vpop.permute.xlu0 %1907
    %1909 = vrot.lane.b32.xlu0 %v62, 64
    %v1910 = vpop.permute.xlu0 %1909
    %v1916 = vsel %vm65, %v1898, 0
    %1918 = vmatprep.subr.mxu0 0.0
    %1919 = vmatpush1.msra.mxu0 %v1904
    %1920 = vmatprep.subr.mxu0 0.0
    %1921 = vmatpush1.msra.mxu0 %v1906
    %1922 = vmatprep.subr.mxu0 0.0
    %1923 = vmatpush1.msra.mxu0 %v1908
    %1924 = vmatprep.subr.mxu0 0.0
    %1925 = vmatpush1.msra.mxu0 %v1910
    %1926 = vmatprep.subr.mxu0 0.0
    %1927 = vmatpush1.msra.mxu0 0.0
    %1928 = vmatprep.subr.mxu0 0.0
    %1929 = vmatpush1.msra.mxu0 0.0
    %1930 = vmatprep.subr.mxu0 0.0
    %1931 = vmatpush1.msra.mxu0 0.0
    %1932 = vmatprep.subr.mxu0 0.0
    %1933 = vmatpush1.msra.mxu0 0.0
    %1934 = vmatprep.subr.mxu0 0.0
    %1935 = vmatpush1.msra.mxu0 0.0
    %1936 = vmatprep.subr.mxu0 0.0
    %1937 = vmatpush1.msra.mxu0 0.0
    %1938 = vmatprep.subr.mxu0 0.0
    %1939 = vmatpush1.msra.mxu0 0.0
    %1940 = vmatprep.subr.mxu0 0.0
    %1941 = vmatpush1.msra.mxu0 0.0
    %1942 = vmatprep.subr.mxu0 0.0
    %1943 = vmatpush1.msra.mxu0 0.0
    %1944 = vmatprep.subr.mxu0 0.0
    %1945 = vmatpush1.msra.mxu0 0.0
    %1946 = vmatprep.subr.mxu0 0.0
    %1947 = vmatpush1.msra.mxu0 0.0
    %1948 = vmatprep.subr.mxu0 0.0
    %1949 = vmatpush1.msra.mxu0 0.0
    %1950 = vmatprep.subr.mxu0 0.0
    %1951 = vmatpush1.msra.mxu0 0.0
    %1952 = vmatprep.subr.mxu0 0.0
    %1953 = vmatpush1.msra.mxu0 0.0
    %1954 = vmatprep.subr.mxu0 0.0
    %1955 = vmatpush1.msra.mxu0 0.0
    %1956 = vmatprep.subr.mxu0 0.0
    %1957 = vmatpush1.msra.mxu0 0.0
    %1958 = vmatprep.subr.mxu0 0.0
    %1959 = vmatpush1.msra.mxu0 0.0
    %1960 = vmatprep.subr.mxu0 0.0
    %1961 = vmatpush1.msra.mxu0 0.0
    %1962 = vmatprep.subr.mxu0 0.0
    %1963 = vmatpush1.msra.mxu0 0.0
    %1964 = vmatprep.subr.mxu0 0.0
    %1965 = vmatpush1.msra.mxu0 0.0
    %1966 = vmatprep.subr.mxu0 0.0
    %1967 = vmatpush1.msra.mxu0 0.0
    %1968 = vmatprep.subr.mxu0 0.0
    %1969 = vmatpush1.msra.mxu0 0.0
    %1970 = vmatprep.subr.mxu0 0.0
    %1971 = vmatpush1.msra.mxu0 0.0
    %1972 = vmatprep.subr.mxu0 0.0
    %1973 = vmatpush1.msra.mxu0 0.0
    %1974 = vmatprep.subr.mxu0 0.0
    %1975 = vmatpush1.msra.mxu0 0.0
    %1976 = vmatprep.subr.mxu0 0.0
    %1977 = vmatpush1.msra.mxu0 0.0
    %1978 = vmatprep.subr.mxu0 0.0
    %1979 = vmatpush1.msra.mxu0 0.0
    %1980 = vmatprep.subr.mxu0 0.0
    %1981 = vmatpush1.msra.mxu0 0.0
    %1982 = vmatprep.mubr.f32.mxu0 0.0
    %1983 = vmatmul.mubr.f32.gmra.mrb[0].mxu0 %v1916
    %v1984 = vpop.f32.mrb[0].mxu0
    %v1985 = vadd.f32 %v1902, %v1984
    %v1986 = vpop.f32.mrb[0].mxu0
    %1987 = vdwg.mxu0
    %v1988 = vmax.f32 %v1985, 0.0
    %1990 = vset.pattern.permute.xlu0 64
    %1991 = vperm.xlu0 %1990, %v64
    %v1992 = vpop.permute.xlu0 %1991
    %1994 = vrot.lane.b32.xlu0 %v64, 96
    %v1995 = vpop.permute.xlu0 %1994
    %v1996 = vsel %vm65, %v1995, 0
    %v1999 = vsel %vm65, %v1988, 0
    %2001 = vmatprep.subr.mxu0 0.0
    %2002 = vmatpush1.xpose.msra.mxu0 %v1999
    %2003 = vmatprep.subr.mxu0 0.0
    %2004 = vmatpush1.xpose.msra.mxu0 0.0
    %2005 = vmatprep.subr.mxu0 0.0
    %2006 = vmatpush1.xpose.msra.mxu0 0.0
    %2007 = vmatprep.subr.mxu0 0.0
    %2008 = vmatpush1.xpose.msra.mxu0 0.0
    %2009 = vmatprep.subr.mxu0 0.0
    %2010 = vmatpush1.xpose.msra.mxu0 0.0
    %2011 = vmatprep.subr.mxu0 0.0
    %2012 = vmatpush1.xpose.msra.mxu0 0.0
    %2013 = vmatprep.subr.mxu0 0.0
    %2014 = vmatpush1.xpose.msra.mxu0 0.0
    %2015 = vmatprep.subr.mxu0 0.0
    %2016 = vmatpush1.xpose.msra.mxu0 0.0
    %2017 = vmatprep.subr.mxu0 0.0
    %2018 = vmatpush1.xpose.msra.mxu0 0.0
    %2019 = vmatprep.subr.mxu0 0.0
    %2020 = vmatpush1.xpose.msra.mxu0 0.0
    %2021 = vmatprep.subr.mxu0 0.0
    %2022 = vmatpush1.xpose.msra.mxu0 0.0
    %2023 = vmatprep.subr.mxu0 0.0
    %2024 = vmatpush1.xpose.msra.mxu0 0.0
    %2025 = vmatprep.subr.mxu0 0.0
    %2026 = vmatpush1.xpose.msra.mxu0 0.0
    %2027 = vmatprep.subr.mxu0 0.0
    %2028 = vmatpush1.xpose.msra.mxu0 0.0
    %2029 = vmatprep.subr.mxu0 0.0
    %2030 = vmatpush1.xpose.msra.mxu0 0.0
    %2031 = vmatprep.subr.mxu0 0.0
    %2032 = vmatpush1.xpose.msra.mxu0 0.0
    %2033 = vmatprep.subr.mxu0 0.0
    %2034 = vmatpush1.xpose.msra.mxu0 0.0
    %2035 = vmatprep.subr.mxu0 0.0
    %2036 = vmatpush1.xpose.msra.mxu0 0.0
    %2037 = vmatprep.subr.mxu0 0.0
    %2038 = vmatpush1.xpose.msra.mxu0 0.0
    %2039 = vmatprep.subr.mxu0 0.0
    %2040 = vmatpush1.xpose.msra.mxu0 0.0
    %2041 = vmatprep.subr.mxu0 0.0
    %2042 = vmatpush1.xpose.msra.mxu0 0.0
    %2043 = vmatprep.subr.mxu0 0.0
    %2044 = vmatpush1.xpose.msra.mxu0 0.0
    %2045 = vmatprep.subr.mxu0 0.0
    %2046 = vmatpush1.xpose.msra.mxu0 0.0
    %2047 = vmatprep.subr.mxu0 0.0
    %2048 = vmatpush1.xpose.msra.mxu0 0.0
    %2049 = vmatprep.subr.mxu0 0.0
    %2050 = vmatpush1.xpose.msra.mxu0 0.0
    %2051 = vmatprep.subr.mxu0 0.0
    %2052 = vmatpush1.xpose.msra.mxu0 0.0
    %2053 = vmatprep.subr.mxu0 0.0
    %2054 = vmatpush1.xpose.msra.mxu0 0.0
    %2055 = vmatprep.subr.mxu0 0.0
    %2056 = vmatpush1.xpose.msra.mxu0 0.0
    %2057 = vmatprep.subr.mxu0 0.0
    %2058 = vmatpush1.xpose.msra.mxu0 0.0
    %2059 = vmatprep.subr.mxu0 0.0
    %2060 = vmatpush1.xpose.msra.mxu0 0.0
    %2061 = vmatprep.subr.mxu0 0.0
    %2062 = vmatpush1.xpose.msra.mxu0 0.0
    %2063 = vmatprep.subr.mxu0 0.0
    %2064 = vmatpush1.xpose.msra.mxu0 0.0
    %2065 = vmatprep.mubr.f32.mxu0 0.0
    %2066 = vmatmul.mubr.f32.gmra.mrb[0].mxu0 %v1996
    %v2067 = vpop.f32.mrb[0].mxu0
    %v2068 = vadd.f32 %v1992, %v2067
    %v2069 = vpop.f32.mrb[0].mxu0
    %2070 = vdwg.mxu0
    %vm2071 = vcmask 57344
    %v2072 = vsel %vm2071, %v2068, -inf
    %2073 = vmax.xlane.f32.xlu0 %v2072
    %v2074 = vpop.xlane.xlu0 %2073
    %v2075 = vsub.f32 %v2068, %v2074
    %v2076 = vmul.f32 %v2075, 1.442695
    %v2077 = vpow.pop %v2076
    %v2078 = vsel %vm2071, %v2077, 0.0
    %2079 = vadd.xlane.f32.xlu0 %v2078
    %v2080 = vpop.xlane.xlu0 %2079
    %v2081 = vrcp.pop %v2080
    %v2082 = vmul.f32 %v2077, %v2081
    %2083 = vst.msk [vmem:[#allocation7] sm:$0x1] %vm2071, %v2082
    // Predicated region
    $region18: #{tpu_custom_call.1} parent=1 // pred_check
      _
    $region19: #{tpu_custom_call.1} parent=1 // pred_check_branch
      %2085 = sbr.rel (0) target = $region21
    $region20: #{tpu_custom_call.1} parent=1 // pred_region
      %s2087 = ssub.s32 16, 16
      %2088 = vsyncadd [#allocation4], %s2087
      %s2090 = sshll.u32 [#allocation7], 4
      %s2091 = int_to_ptr.vmem [resolvable:$true] %s2090
      %2093 = dma.vmem_to_hbm [thread:$0]  %s2091, 16, %s2, [#allocation4]
    $region21: #{tpu_custom_call.1} parent=1 // pred_fallthru
      _
    // Predicated region
    $region22: #{tpu_custom_call.1} parent=1 // pred_check
      _
    $region23: #{tpu_custom_call.1} parent=1 // pred_check_branch
      %2095 = sbr.rel (0) target = $region25
    $region24: #{tpu_custom_call.1} parent=1 // pred_region
      %2096 = dma.done [#allocation4], 16
    $region25: #{tpu_custom_call.1} parent=1 // pred_fallthru
      _
    %2097 = vsyncpa [#allocation3], 1
    %2098 = vsyncpa [#allocation6], 1
    %2099 = vsyncpa [#allocation4], 1

</llo_original>
